<compile_context>
chip_gen: v7x
topology: tpu7x:2x2x1
jax: 0.10.0
libtpu: 0.0.40
codegen_flags: <defaults>
</compile_context>

<pallas_src>
import jax
import jax.numpy as jnp
from jax.experimental import pallas as pl
from jax.experimental.pallas import tpu as pltpu


def _biaffine_kernel(h_ref, w_ref, vT_ref, o_ref, t_ref):
    # h_ref : (1, 1, TL, X)       compute dtype, one (batch, head, li) tile of h
    # w_ref : (1, X, D*Y)         compute dtype, fused weight for this head
    # vT_ref: (1, 1, Y, TK)       compute dtype, v pre-transposed (seq on lanes)
    # o_ref : (1, 1, D, TL, TK)   output dtype
    # t_ref : (TL, D*Y)           VMEM scratch, persists across ki iterations
    ki = pl.program_id(3)

    # Stage 1 (fused over all D output slices): one wide MXU matmul.
    # Only recompute when the (head, batch, li) block changes (ki resets to 0).
    @pl.when(ki == 0)
    def _():
        t_ref[...] = jnp.dot(
            h_ref[0, 0], w_ref[0], preferred_element_type=jnp.float32
        ).astype(t_ref.dtype)

    vT = vT_ref[0, 0]                       # (Y, TK): seq on the lane axis
    y = vT.shape[0]
    t_all = t_ref[...]                      # (TL, D*Y)
    d_out = o_ref.shape[2]

    # Stage 2: small static unroll over out_head_dim (D is small, e.g. 8).
    for d in range(d_out):
        t_d = t_all[:, d * y:(d + 1) * y]                             # (TL, Y)
        o = jnp.dot(t_d, vT, preferred_element_type=jnp.float32)      # (TL, TK)
        o_ref[0, 0, d] = o.astype(o_ref.dtype)


def multi_head_biaffine(h, v, W, num_heads, out_size, *, tile=256,
                        compute_dtype=None, out_dtype=None):
    """h, v: (B, L, hidden); W: (num_heads, out_head_dim, in_head_dim, in_head_dim).

    tile: L x L output tile edge (use a multiple of 128 for lane-dense stores).
    compute_dtype / out_dtype: set to jnp.bfloat16 for ~2x on the MXU + halved
    HBM traffic; accumulation is always f32.
    """
    bsz, max_len, hidden = h.shape
    assert hidden % num_heads == 0 and out_size % num_heads == 0
    in_head_dim = hidden // num_heads
    out_head_dim = out_size // num_heads

    compute_dtype = jnp.dtype(compute_dtype) if compute_dtype is not None else h.dtype
    out_dtype = jnp.dtype(out_dtype) if out_dtype is not None else h.dtype

    # Pad the sequence axis so every output tile is full and lane-dense.
    lp = pl.cdiv(max_len, tile) * tile
    pad = lp - max_len
    if pad:
        h = jnp.pad(h, ((0, 0), (0, pad), (0, 0)))
        v = jnp.pad(v, ((0, 0), (0, pad), (0, 0)))

    h = h.astype(compute_dtype)
    v = v.astype(compute_dtype)
    Wc = W.astype(compute_dtype)

    # (B, Lp, H, X) -> (B, H, Lp, X)
    h_heads = h.reshape(bsz, lp, num_heads, in_head_dim).transpose(0, 2, 1, 3)
    # v transposed so stage-2 is a plain NN dot with seq on the lane axis.
    vT_heads = v.reshape(bsz, lp, num_heads, in_head_dim).transpose(0, 2, 3, 1)
    # W fused: (H, D, X, Y) -> (H, X, D*Y) so stage-1 is one wide MXU matmul.
    w_fused = Wc.transpose(0, 2, 1, 3).reshape(
        num_heads, in_head_dim, out_head_dim * in_head_dim)

    n_tiles = lp // tile
    grid = (num_heads, bsz, n_tiles, n_tiles)   # ki innermost

    cdt_bytes = jnp.dtype(compute_dtype).itemsize
    odt_bytes = jnp.dtype(out_dtype).itemsize

    # Advisory cost estimate for the XLA scheduler.
    flops = (2 * bsz * num_heads * lp * in_head_dim * out_head_dim * in_head_dim
             + 2 * bsz * num_heads * out_head_dim * lp * lp * in_head_dim)
    bytes_accessed = (2 * bsz * lp * hidden * cdt_bytes
                      + int(w_fused.size) * cdt_bytes
                      + bsz * num_heads * out_head_dim * lp * lp * odt_bytes)

    # VMEM budget: double-buffered tiles + per-head weight + t_all scratch.
    out_tile_bytes = out_head_dim * tile * tile * odt_bytes
    in_tile_bytes = 2 * tile * in_head_dim * cdt_bytes
    w_tile_bytes = in_head_dim * out_head_dim * in_head_dim * cdt_bytes
    scratch_bytes = tile * out_head_dim * in_head_dim * cdt_bytes
    vmem_needed = 2 * (out_tile_bytes + in_tile_bytes + w_tile_bytes) + scratch_bytes
    vmem_limit = int(min(56 * 1024 * 1024,          # stay under v7x's 64 MiB
                         max(2 * vmem_needed, 16 * 1024 * 1024)))

    out = pl.pallas_call(
        _biaffine_kernel,
        out_shape=jax.ShapeDtypeStruct(
            (bsz, num_heads, out_head_dim, lp, lp), out_dtype),
        grid_spec=pltpu.PrefetchScalarGridSpec(
            num_scalar_prefetch=0,
            grid=grid,
            in_specs=[
                # h tile: constant across ki -> stays resident for all ki.
                pl.BlockSpec((1, 1, tile, in_head_dim),
                             lambda hd, b, li, ki: (b, hd, li, 0)),
                # per-head fused weight: constant across b/li/ki -> resident.
                pl.BlockSpec((1, in_head_dim, out_head_dim * in_head_dim),
                             lambda hd, b, li, ki: (hd, 0, 0)),
                # v^T tile: changes with ki (innermost).
                pl.BlockSpec((1, 1, in_head_dim, tile),
                             lambda hd, b, li, ki: (b, hd, 0, ki)),
            ],
            out_specs=pl.BlockSpec(
                (1, 1, out_head_dim, tile, tile),
                lambda hd, b, li, ki: (b, hd, 0, li, ki)),
            scratch_shapes=[
                pltpu.VMEM((tile, out_head_dim * in_head_dim), compute_dtype)],
        ),
        compiler_params=pltpu.CompilerParams(
            dimension_semantics=("parallel", "parallel", "parallel", "arbitrary"),
            vmem_limit_bytes=vmem_limit,
        ),
        cost_estimate=pl.CostEstimate(
            flops=int(flops), transcendentals=0, bytes_accessed=int(bytes_accessed)),
    )(h_heads, w_fused, vT_heads)

    # (B, H, D, Lp, Lp) -> crop padding -> (B, out_size, L, L)
    out = out[:, :, :, :max_len, :max_len]
    return out.reshape(bsz, out_size, max_len, max_len)


def _init_params(key, hidden_size, out_size, num_heads):
    in_head_dim = hidden_size // num_heads
    out_head_dim = out_size // num_heads
    # Xavier-normal (fan_in = X*Y, fan_out = D*Y, matching torch's fan calc).
    fan_in = in_head_dim * in_head_dim
    fan_out = out_head_dim * in_head_dim
    std = (2.0 / (fan_in + fan_out)) ** 0.5
    W = std * jax.random.normal(
        key, (num_heads, out_head_dim, in_head_dim, in_head_dim), dtype=jnp.float32)
    return W


if __name__ == "__main__":
    # Small shapes consistent with the module's forward.
    bsz, max_len, hidden_size = 2, 8, 32
    num_heads = 4
    out_size = hidden_size  # default in __init__

    key = jax.random.PRNGKey(0)
    k_w, k_h, k_v = jax.random.split(key, 3)

    W = _init_params(k_w, hidden_size, out_size, num_heads)
    h = jax.random.normal(k_h, (bsz, max_len, hidden_size), dtype=jnp.float32)
    v = jax.random.normal(k_v, (bsz, max_len, hidden_size), dtype=jnp.float32)

    # Pure-JAX reference of the PyTorch einsum.
    in_head_dim = hidden_size // num_heads
    h_r = h.reshape(bsz, max_len, num_heads, in_head_dim)
    v_r = v.reshape(bsz, max_len, num_heads, in_head_dim)
    ref = jnp.einsum("blhx,hdxy,bkhy->bhdlk", h_r, W, v_r)
    ref = ref.reshape(bsz, out_size, max_len, max_len)

    # f32 path (tight correctness check). tile=128 keeps the padded demo small;
    # use the default tile=256 (or 512 on v6e) at realistic sequence lengths.
    out = multi_head_biaffine(h, v, W, num_heads, out_size, tile=128)
    out = jax.block_until_ready(out)
    assert out.shape == (bsz, out_size, max_len, max_len)
    assert jnp.allclose(out, ref, atol=1e-4, rtol=1e-4), "f32 mismatch vs reference"

    # bf16 fast path (halved HBM traffic / 2x MXU); loose tolerance.
    out_bf16 = multi_head_biaffine(h, v, W, num_heads, out_size, tile=128,
                                   compute_dtype=jnp.bfloat16,
                                   out_dtype=jnp.bfloat16)
    out_bf16 = jax.block_until_ready(out_bf16).astype(jnp.float32)
    assert jnp.allclose(out_bf16, ref, atol=1e-1, rtol=1e-1), "bf16 mismatch vs reference"

    print("KERNEL_OK")
</pallas_src>

<mosaic_0001>
module attributes {stable_mosaic.version = 11 : i64} {
  func.func @_biaffine_kernel(%arg0: i32, %arg1: i32, %arg2: i32, %arg3: i32, %arg4: memref<1x1x128x8xf32, #tpu.memory_space<vmem>>, %arg5: memref<1x8x64xf32, #tpu.memory_space<vmem>>, %arg6: memref<1x1x8x128xf32, #tpu.memory_space<vmem>>, %arg7: memref<1x1x8x128x128xf32, #tpu.memory_space<vmem>>, %arg8: memref<128x64xf32, #tpu.memory_space<vmem>>) attributes {dimension_semantics = [#tpu.dimension_semantics<parallel>, #tpu.dimension_semantics<parallel>, #tpu.dimension_semantics<parallel>, #tpu.dimension_semantics<arbitrary>], iteration_bounds = array<i64: 4, 2, 1, 1>, scalar_prefetch = 0 : i64, scratch_operands = 1 : i64, tpu.core_type = #tpu.core_type<tc>, window_params = [{transform_indices = @transform_0, window_bounds = array<i64: 1, 1, 128, 8>}, {transform_indices = @transform_1, window_bounds = array<i64: 1, 8, 64>}, {transform_indices = @transform_2, window_bounds = array<i64: 1, 1, 8, 128>}, {transform_indices = @transform_3, window_bounds = array<i64: 1, 1, 8, 128, 128>}]} {
    %c0_i32 = arith.constant 0 : i32
    %0 = arith.cmpi eq, %arg3, %c0_i32 : i32
    %1 = arith.extui %0 : i1 to i32
    %c0_i32_0 = arith.constant 0 : i32
    %2 = arith.cmpi ne, %1, %c0_i32_0 : i32
    scf.if %2 {
      %c0_46 = arith.constant 0 : index
      %c0_47 = arith.constant 0 : index
      %c0_48 = arith.constant 0 : index
      %c0_49 = arith.constant 0 : index
      %46 = vector.load %arg4[%c0_46, %c0_47, %c0_48, %c0_49] : memref<1x1x128x8xf32, #tpu.memory_space<vmem>>, vector<1x1x128x8xf32>
      %47 = vector.shape_cast %46 : vector<1x1x128x8xf32> to vector<128x8xf32>
      %c0_50 = arith.constant 0 : index
      %c0_51 = arith.constant 0 : index
      %c0_52 = arith.constant 0 : index
      %48 = vector.load %arg5[%c0_50, %c0_51, %c0_52] : memref<1x8x64xf32, #tpu.memory_space<vmem>>, vector<1x8x64xf32>
      %49 = vector.shape_cast %48 : vector<1x8x64xf32> to vector<8x64xf32>
      %cst_53 = arith.constant dense<0.000000e+00> : vector<128x64xf32>
      %50 = tpu.matmul %47, %49, %cst_53 {dimension_numbers = #tpu.dot_dimension_numbers<[1], [0], [0], [1], [0, 0, 1, 1], [], []>} : vector<128x8xf32>, vector<8x64xf32>, vector<128x64xf32> -> vector<128x64xf32>
      %c0_54 = arith.constant 0 : index
      %c0_55 = arith.constant 0 : index
      %51 = vector.load %arg8[%c0_54, %c0_55] : memref<128x64xf32, #tpu.memory_space<vmem>>, vector<128x64xf32>
      tpu.vector_store %arg8[%c0_54, %c0_55], %50 {strides = array<i32>} : memref<128x64xf32, #tpu.memory_space<vmem>>, vector<128x64xf32>,
    } else {
    }
    %c0 = arith.constant 0 : index
    %c0_1 = arith.constant 0 : index
    %c0_2 = arith.constant 0 : index
    %c0_3 = arith.constant 0 : index
    %3 = vector.load %arg6[%c0, %c0_1, %c0_2, %c0_3] : memref<1x1x8x128xf32, #tpu.memory_space<vmem>>, vector<1x1x8x128xf32>
    %4 = vector.shape_cast %3 : vector<1x1x8x128xf32> to vector<8x128xf32>
    %c0_4 = arith.constant 0 : index
    %c0_5 = arith.constant 0 : index
    %5 = vector.load %arg8[%c0_4, %c0_5] : memref<128x64xf32, #tpu.memory_space<vmem>>, vector<128x64xf32>
    %6 = vector.extract_strided_slice %5 {offsets = [0, 0], sizes = [128, 8], strides = [1, 1]} : vector<128x64xf32> to vector<128x8xf32>
    %cst = arith.constant dense<0.000000e+00> : vector<128x128xf32>
    %7 = tpu.matmul %6, %4, %cst {dimension_numbers = #tpu.dot_dimension_numbers<[1], [0], [0], [1], [0, 0, 1, 1], [], []>} : vector<128x8xf32>, vector<8x128xf32>, vector<128x128xf32> -> vector<128x128xf32>
    %c0_6 = arith.constant 0 : index
    %c0_7 = arith.constant 0 : index
    %c0_8 = arith.constant 0 : index
    %c0_9 = arith.constant 0 : index
    %c0_10 = arith.constant 0 : index
    %8 = vector.load %arg7[%c0_6, %c0_7, %c0_8, %c0_9, %c0_10] : memref<1x1x8x128x128xf32, #tpu.memory_space<vmem>>, vector<1x1x1x128x128xf32>
    %9 = vector.shape_cast %8 : vector<1x1x1x128x128xf32> to vector<128x128xf32>
    %10 = vector.shape_cast %7 : vector<128x128xf32> to vector<1x1x1x128x128xf32>
    tpu.vector_store %arg7[%c0_6, %c0_7, %c0_8, %c0_9, %c0_10], %10 {strides = array<i32>} : memref<1x1x8x128x128xf32, #tpu.memory_space<vmem>>, vector<1x1x1x128x128xf32>,
    %11 = vector.extract_strided_slice %5 {offsets = [0, 8], sizes = [128, 8], strides = [1, 1]} : vector<128x64xf32> to vector<128x8xf32>
    %cst_11 = arith.constant dense<0.000000e+00> : vector<128x128xf32>
    %12 = tpu.matmul %11, %4, %cst_11 {dimension_numbers = #tpu.dot_dimension_numbers<[1], [0], [0], [1], [0, 0, 1, 1], [], []>} : vector<128x8xf32>, vector<8x128xf32>, vector<128x128xf32> -> vector<128x128xf32>
    %c0_12 = arith.constant 0 : index
    %c0_13 = arith.constant 0 : index
    %c1 = arith.constant 1 : index
    %c0_14 = arith.constant 0 : index
    %c0_15 = arith.constant 0 : index
    %13 = vector.load %arg7[%c0_12, %c0_13, %c1, %c0_14, %c0_15] : memref<1x1x8x128x128xf32, #tpu.memory_space<vmem>>, vector<1x1x1x128x128xf32>
    %14 = vector.shape_cast %13 : vector<1x1x1x128x128xf32> to vector<128x128xf32>
    %15 = vector.shape_cast %12 : vector<128x128xf32> to vector<1x1x1x128x128xf32>
    tpu.vector_store %arg7[%c0_12, %c0_13, %c1, %c0_14, %c0_15], %15 {strides = array<i32>} : memref<1x1x8x128x128xf32, #tpu.memory_space<vmem>>, vector<1x1x1x128x128xf32>,
    %16 = vector.extract_strided_slice %5 {offsets = [0, 16], sizes = [128, 8], strides = [1, 1]} : vector<128x64xf32> to vector<128x8xf32>
    %cst_16 = arith.constant dense<0.000000e+00> : vector<128x128xf32>
    %17 = tpu.matmul %16, %4, %cst_16 {dimension_numbers = #tpu.dot_dimension_numbers<[1], [0], [0], [1], [0, 0, 1, 1], [], []>} : vector<128x8xf32>, vector<8x128xf32>, vector<128x128xf32> -> vector<128x128xf32>
    %c0_17 = arith.constant 0 : index
    %c0_18 = arith.constant 0 : index
    %c2 = arith.constant 2 : index
    %c0_19 = arith.constant 0 : index
    %c0_20 = arith.constant 0 : index
    %18 = vector.load %arg7[%c0_17, %c0_18, %c2, %c0_19, %c0_20] : memref<1x1x8x128x128xf32, #tpu.memory_space<vmem>>, vector<1x1x1x128x128xf32>
    %19 = vector.shape_cast %18 : vector<1x1x1x128x128xf32> to vector<128x128xf32>
    %20 = vector.shape_cast %17 : vector<128x128xf32> to vector<1x1x1x128x128xf32>
    tpu.vector_store %arg7[%c0_17, %c0_18, %c2, %c0_19, %c0_20], %20 {strides = array<i32>} : memref<1x1x8x128x128xf32, #tpu.memory_space<vmem>>, vector<1x1x1x128x128xf32>,
    %21 = vector.extract_strided_slice %5 {offsets = [0, 24], sizes = [128, 8], strides = [1, 1]} : vector<128x64xf32> to vector<128x8xf32>
    %cst_21 = arith.constant dense<0.000000e+00> : vector<128x128xf32>
    %22 = tpu.matmul %21, %4, %cst_21 {dimension_numbers = #tpu.dot_dimension_numbers<[1], [0], [0], [1], [0, 0, 1, 1], [], []>} : vector<128x8xf32>, vector<8x128xf32>, vector<128x128xf32> -> vector<128x128xf32>
    %c0_22 = arith.constant 0 : index
    %c0_23 = arith.constant 0 : index
    %c3 = arith.constant 3 : index
    %c0_24 = arith.constant 0 : index
    %c0_25 = arith.constant 0 : index
    %23 = vector.load %arg7[%c0_22, %c0_23, %c3, %c0_24, %c0_25] : memref<1x1x8x128x128xf32, #tpu.memory_space<vmem>>, vector<1x1x1x128x128xf32>
    %24 = vector.shape_cast %23 : vector<1x1x1x128x128xf32> to vector<128x128xf32>
    %25 = vector.shape_cast %22 : vector<128x128xf32> to vector<1x1x1x128x128xf32>
    tpu.vector_store %arg7[%c0_22, %c0_23, %c3, %c0_24, %c0_25], %25 {strides = array<i32>} : memref<1x1x8x128x128xf32, #tpu.memory_space<vmem>>, vector<1x1x1x128x128xf32>,
    %26 = vector.extract_strided_slice %5 {offsets = [0, 32], sizes = [128, 8], strides = [1, 1]} : vector<128x64xf32> to vector<128x8xf32>
    %cst_26 = arith.constant dense<0.000000e+00> : vector<128x128xf32>
    %27 = tpu.matmul %26, %4, %cst_26 {dimension_numbers = #tpu.dot_dimension_numbers<[1], [0], [0], [1], [0, 0, 1, 1], [], []>} : vector<128x8xf32>, vector<8x128xf32>, vector<128x128xf32> -> vector<128x128xf32>
    %c0_27 = arith.constant 0 : index
    %c0_28 = arith.constant 0 : index
    %c4 = arith.constant 4 : index
    %c0_29 = arith.constant 0 : index
    %c0_30 = arith.constant 0 : index
    %28 = vector.load %arg7[%c0_27, %c0_28, %c4, %c0_29, %c0_30] : memref<1x1x8x128x128xf32, #tpu.memory_space<vmem>>, vector<1x1x1x128x128xf32>
    %29 = vector.shape_cast %28 : vector<1x1x1x128x128xf32> to vector<128x128xf32>
    %30 = vector.shape_cast %27 : vector<128x128xf32> to vector<1x1x1x128x128xf32>
    tpu.vector_store %arg7[%c0_27, %c0_28, %c4, %c0_29, %c0_30], %30 {strides = array<i32>} : memref<1x1x8x128x128xf32, #tpu.memory_space<vmem>>, vector<1x1x1x128x128xf32>,
    %31 = vector.extract_strided_slice %5 {offsets = [0, 40], sizes = [128, 8], strides = [1, 1]} : vector<128x64xf32> to vector<128x8xf32>
    %cst_31 = arith.constant dense<0.000000e+00> : vector<128x128xf32>
    %32 = tpu.matmul %31, %4, %cst_31 {dimension_numbers = #tpu.dot_dimension_numbers<[1], [0], [0], [1], [0, 0, 1, 1], [], []>} : vector<128x8xf32>, vector<8x128xf32>, vector<128x128xf32> -> vector<128x128xf32>
    %c0_32 = arith.constant 0 : index
    %c0_33 = arith.constant 0 : index
    %c5 = arith.constant 5 : index
    %c0_34 = arith.constant 0 : index
    %c0_35 = arith.constant 0 : index
    %33 = vector.load %arg7[%c0_32, %c0_33, %c5, %c0_34, %c0_35] : memref<1x1x8x128x128xf32, #tpu.memory_space<vmem>>, vector<1x1x1x128x128xf32>
    %34 = vector.shape_cast %33 : vector<1x1x1x128x128xf32> to vector<128x128xf32>
    %35 = vector.shape_cast %32 : vector<128x128xf32> to vector<1x1x1x128x128xf32>
    tpu.vector_store %arg7[%c0_32, %c0_33, %c5, %c0_34, %c0_35], %35 {strides = array<i32>} : memref<1x1x8x128x128xf32, #tpu.memory_space<vmem>>, vector<1x1x1x128x128xf32>,
    %36 = vector.extract_strided_slice %5 {offsets = [0, 48], sizes = [128, 8], strides = [1, 1]} : vector<128x64xf32> to vector<128x8xf32>
    %cst_36 = arith.constant dense<0.000000e+00> : vector<128x128xf32>
    %37 = tpu.matmul %36, %4, %cst_36 {dimension_numbers = #tpu.dot_dimension_numbers<[1], [0], [0], [1], [0, 0, 1, 1], [], []>} : vector<128x8xf32>, vector<8x128xf32>, vector<128x128xf32> -> vector<128x128xf32>
    %c0_37 = arith.constant 0 : index
    %c0_38 = arith.constant 0 : index
    %c6 = arith.constant 6 : index
    %c0_39 = arith.constant 0 : index
    %c0_40 = arith.constant 0 : index
    %38 = vector.load %arg7[%c0_37, %c0_38, %c6, %c0_39, %c0_40] : memref<1x1x8x128x128xf32, #tpu.memory_space<vmem>>, vector<1x1x1x128x128xf32>
    %39 = vector.shape_cast %38 : vector<1x1x1x128x128xf32> to vector<128x128xf32>
    %40 = vector.shape_cast %37 : vector<128x128xf32> to vector<1x1x1x128x128xf32>
    tpu.vector_store %arg7[%c0_37, %c0_38, %c6, %c0_39, %c0_40], %40 {strides = array<i32>} : memref<1x1x8x128x128xf32, #tpu.memory_space<vmem>>, vector<1x1x1x128x128xf32>,
    %41 = vector.extract_strided_slice %5 {offsets = [0, 56], sizes = [128, 8], strides = [1, 1]} : vector<128x64xf32> to vector<128x8xf32>
    %cst_41 = arith.constant dense<0.000000e+00> : vector<128x128xf32>
    %42 = tpu.matmul %41, %4, %cst_41 {dimension_numbers = #tpu.dot_dimension_numbers<[1], [0], [0], [1], [0, 0, 1, 1], [], []>} : vector<128x8xf32>, vector<8x128xf32>, vector<128x128xf32> -> vector<128x128xf32>
    %c0_42 = arith.constant 0 : index
    %c0_43 = arith.constant 0 : index
    %c7 = arith.constant 7 : index
    %c0_44 = arith.constant 0 : index
    %c0_45 = arith.constant 0 : index
    %43 = vector.load %arg7[%c0_42, %c0_43, %c7, %c0_44, %c0_45] : memref<1x1x8x128x128xf32, #tpu.memory_space<vmem>>, vector<1x1x1x128x128xf32>
    %44 = vector.shape_cast %43 : vector<1x1x1x128x128xf32> to vector<128x128xf32>
    %45 = vector.shape_cast %42 : vector<128x128xf32> to vector<1x1x1x128x128xf32>
    tpu.vector_store %arg7[%c0_42, %c0_43, %c7, %c0_44, %c0_45], %45 {strides = array<i32>} : memref<1x1x8x128x128xf32, #tpu.memory_space<vmem>>, vector<1x1x1x128x128xf32>,
    return
  }
  func.func @transform_0(%arg0: i32, %arg1: i32, %arg2: i32, %arg3: i32) -> (i32, i32, i32, i32) {
    %c0_i32 = arith.constant 0 : i32
    %c0_i32_0 = arith.constant 0 : i32
    return %arg1, %arg0, %arg2, %c0_i32 : i32, i32, i32, i32
  }
  func.func @transform_1(%arg0: i32, %arg1: i32, %arg2: i32, %arg3: i32) -> (i32, i32, i32) {
    %c0_i32 = arith.constant 0 : i32
    %c0_i32_0 = arith.constant 0 : i32
    %c0_i32_1 = arith.constant 0 : i32
    return %arg0, %c0_i32, %c0_i32_0 : i32, i32, i32
  }
  func.func @transform_2(%arg0: i32, %arg1: i32, %arg2: i32, %arg3: i32) -> (i32, i32, i32, i32) {
    %c0_i32 = arith.constant 0 : i32
    %c0_i32_0 = arith.constant 0 : i32
    return %arg1, %arg0, %c0_i32, %arg3 : i32, i32, i32, i32
  }
  func.func @transform_3(%arg0: i32, %arg1: i32, %arg2: i32, %arg3: i32) -> (i32, i32, i32, i32, i32) {
    %c0_i32 = arith.constant 0 : i32
    %c0_i32_0 = arith.constant 0 : i32
    return %arg1, %arg0, %c0_i32, %arg2, %arg3 : i32, i32, i32, i32, i32
  }
}

</mosaic_0001>

<llo_original>
// kernel: tpu_custom_call.1
$region0: #{tpu_custom_call.1}
  #allocation0 [shape = 'u32[]', space=smem, size = 0x4, offset = 0x4, fixed_abs, tag = 'smem constant byte address 0x4 - core index']
  #allocation1 [shape = 'u32[144,128]{1,0:T(1,128)}', space=vmem, size = 0x12000, scoped, tag = 'internal scratch']
  #allocation2 [shape = 'f32[128,64]{1,0:T(8,128)}', space=vmem, size = 0x10000, scoped, tag = 'scratch operand']
  %s0 = inlined_call_operand.vmem [shape: f32[2,4,128,8], index: 0, kind: input, shape index: {}]
  %s1 = inlined_call_operand.hbm [shape: f32[4,8,64], index: 1, kind: input, shape index: {}]
  %s2 = inlined_call_operand.hbm [shape: f32[2,4,8,128], index: 2, kind: input, shape index: {}]
  %s3 = inlined_call_operand.hbm [shape: f32[2,4,8,128,128], index: 3, kind: output, shape index: {}]
  %s4 = sld [smem:[#allocation0]]
  $region57: #{tpu_custom_call.1} parent=0
    _
  %s6 = ssub.s32 1, %s4
  %s7 = scalar_select 0, %s6, %s4
  $region1: #{tpu_custom_call.1} parent=0
    #allocation3 [shape = 'u8[8192]{0}', space=vmem, size = 0x2000, scoped, tag = 'input window, operand 1']
    #allocation4 [shape = 's32[2]{0}', space=sflag, size = 0x8, scoped, tag = 'scoped memory for tpu_custom_call.1']
    #allocation5 [shape = 's32[2]{0}', space=sflag, size = 0x8, scoped, tag = 'scoped memory for tpu_custom_call.1']
    #allocation6 [shape = 'u8[8192]{0}', space=vmem, size = 0x2000, scoped, tag = 'input window, operand 2']
    #allocation7 [shape = 's32[2]{0}', space=sflag, size = 0x8, scoped, tag = 'scoped memory for tpu_custom_call.1']
    #allocation8 [shape = 'u8[1048576]{0}', space=vmem, size = 0x100000, scoped, tag = 'output window, operand 0']
    %8 = vsyncpa [#allocation4], 0
    %s9 = scalar_lea.sflag [#allocation4], 1
    %10 = vsyncpa %s9, 0
    %11 = vsyncpa [#allocation7], 0
    %s12 = scalar_lea.sflag [#allocation7], 1
    %13 = vsyncpa %s12, 0
    %14 = vsyncpa [#allocation5], 0
    %s15 = scalar_lea.sflag [#allocation5], 1
    %16 = vsyncpa %s15, 0
    loop: start=0, step=1, limit=10
    $region2: #{tpu_custom_call.1} parent=1 // loop_pre_header
      _
    $region3: #{tpu_custom_call.1} parent=1 // loop_header
      %s18 = sphi 0, %s22
      %p19 = scmp.ge.s32.totalorder %s18, 10
      %s25 = sphi 0, %s51
      %s26 = sphi 0, %s47
      %s27 = sphi 0, %s43
      %s28 = sphi 0, %s39
      %s29 = sphi 0, %s25
      %s30 = sphi 0, %s26
      %s31 = sphi 0, %s27
      %s32 = sphi 0, %s28
      %s33 = sphi 0, %s29
      %s34 = sphi 0, %s30
      %s35 = sphi 0, %s31
      %s36 = sphi 0, %s32
      %s58 = sphi 0, %s60
      %s61 = sphi 0, %s58
      %s62 = sphi 0, %s61
      %s78 = sphi 0, %s62
      %s84 = sphi 0, %s86
      %s87 = sphi 0, %s84
      %s88 = sphi 0, %s87
      %s104 = sphi 0, %s88
      %s114 = sphi 0, %s116
      %s117 = sphi 0, %s114
      %s118 = sphi 0, %s117
      %s134 = sphi 0, %s118
      %s146 = sphi 0, %s148
      %s149 = sphi 0, %s146
      %s150 = sphi 0, %s149
      %s166 = sphi 0, %s150
    $region4: #{tpu_custom_call.1} parent=1 // loop_header_branch
      %21 = sbr.rel (%p19) target = $region8
    $region5: #{tpu_custom_call.1} parent=1 // loop_body
      %s23 = ssub.s32 %s18, 1
      %s24 = ssub.s32 %s18, 2
      %s37 = sadd.s32 1, %s28
      %p38 = scmp.ge.s32.totalorder %s37, 1
      %s39 = scalar_select %p38, 0, %s37
      %s40 = sadd.s32 1, %s27
      %s41 = scalar_select %p38, %s40, %s27
      %p42 = scmp.ge.s32.totalorder %s41, 1
      %s43 = scalar_select %p42, 0, %s41
      %s44 = sadd.s32 1, %s26
      %s45 = scalar_select %p42, %s44, %s26
      %p46 = scmp.ge.s32.totalorder %s45, 2
      %s47 = scalar_select %p46, 0, %s45
      %s48 = sadd.s32 1, %s25
      %s49 = scalar_select %p46, %s48, %s25
      %p50 = scmp.ge.s32.totalorder %s49, 4
      %s51 = scalar_select %p50, 0, %s49
      %s52 = ssub.s32 %s26, %s47
      %s53 = ssub.s32 %s25, %s51
      %s54 = sor.u32 %s52, %s53
      %s55 = ssub.s32 %s27, %s43
      %s56 = sor.u32 %s54, %s55
      %p57 = scmp.eq.s32.totalorder %s56, 0
      %s59 = sadd.s32 %s58, 1
      %s60 = scalar_select %p57, %s58, %s59
      %p63 = pneg %p57
      %p64 = scmp.eq.s32.totalorder %s18, 7
      %p65 = por %p63, %p64
      %p66 = scmp.ne.s32.totalorder %s58, %s61
      %p67 = scmp.eq.s32.totalorder %s18, 0
      %p68 = por %p66, %p67
      %p69 = scmp.ne.s32.totalorder %s58, %s61
      %p70 = scmp.eq.s32.totalorder %s23, 7
      %p71 = por %p69, %p70
      %p72 = scmp.ne.s32.totalorder %s61, %s62
      %p73 = scmp.eq.s32.totalorder %s23, 0
      %p74 = por %p72, %p73
      %p75 = scmp.ne.s32.totalorder %s61, %s62
      %p76 = scmp.eq.s32.totalorder %s24, 7
      %p77 = por %p75, %p76
      %p79 = scmp.ne.s32.totalorder %s62, %s78
      %p80 = scmp.eq.s32.totalorder %s24, 0
      %p81 = por %p79, %p80
      %s82 = ssub.s32 %s25, %s51
      %p83 = scmp.eq.s32.totalorder %s82, 0
      %s85 = sadd.s32 %s84, 1
      %s86 = scalar_select %p83, %s84, %s85
      %p89 = pneg %p83
      %p90 = scmp.eq.s32.totalorder %s18, 7
      %p91 = por %p89, %p90
      %p92 = scmp.ne.s32.totalorder %s84, %s87
      %p93 = scmp.eq.s32.totalorder %s18, 0
      %p94 = por %p92, %p93
      %p95 = scmp.ne.s32.totalorder %s84, %s87
      %p96 = scmp.eq.s32.totalorder %s23, 7
      %p97 = por %p95, %p96
      %p98 = scmp.ne.s32.totalorder %s87, %s88
      %p99 = scmp.eq.s32.totalorder %s23, 0
      %p100 = por %p98, %p99
      %p101 = scmp.ne.s32.totalorder %s87, %s88
      %p102 = scmp.eq.s32.totalorder %s24, 7
      %p103 = por %p101, %p102
      %p105 = scmp.ne.s32.totalorder %s88, %s104
      %p106 = scmp.eq.s32.totalorder %s24, 0
      %p107 = por %p105, %p106
      %s108 = ssub.s32 %s26, %s47
      %s109 = ssub.s32 %s25, %s51
      %s110 = sor.u32 %s108, %s109
      %s111 = ssub.s32 %s28, %s39
      %s112 = sor.u32 %s110, %s111
      %p113 = scmp.eq.s32.totalorder %s112, 0
      %s115 = sadd.s32 %s114, 1
      %s116 = scalar_select %p113, %s114, %s115
      %p119 = pneg %p113
      %p120 = scmp.eq.s32.totalorder %s18, 7
      %p121 = por %p119, %p120
      %p122 = scmp.ne.s32.totalorder %s114, %s117
      %p123 = scmp.eq.s32.totalorder %s18, 0
      %p124 = por %p122, %p123
      %p125 = scmp.ne.s32.totalorder %s114, %s117
      %p126 = scmp.eq.s32.totalorder %s23, 7
      %p127 = por %p125, %p126
      %p128 = scmp.ne.s32.totalorder %s117, %s118
      %p129 = scmp.eq.s32.totalorder %s23, 0
      %p130 = por %p128, %p129
      %p131 = scmp.ne.s32.totalorder %s117, %s118
      %p132 = scmp.eq.s32.totalorder %s24, 7
      %p133 = por %p131, %p132
      %p135 = scmp.ne.s32.totalorder %s118, %s134
      %p136 = scmp.eq.s32.totalorder %s24, 0
      %p137 = por %p135, %p136
      %s138 = ssub.s32 %s26, %s47
      %s139 = ssub.s32 %s25, %s51
      %s140 = sor.u32 %s138, %s139
      %s141 = ssub.s32 %s27, %s43
      %s142 = sor.u32 %s140, %s141
      %s143 = ssub.s32 %s28, %s39
      %s144 = sor.u32 %s142, %s143
      %p145 = scmp.eq.s32.totalorder %s144, 0
      %s147 = sadd.s32 %s146, 1
      %s148 = scalar_select %p145, %s146, %s147
      %p151 = pneg %p145
      %p152 = scmp.eq.s32.totalorder %s18, 7
      %p153 = por %p151, %p152
      %p154 = scmp.ne.s32.totalorder %s146, %s149
      %p155 = scmp.eq.s32.totalorder %s18, 0
      %p156 = por %p154, %p155
      %p157 = scmp.ne.s32.totalorder %s146, %s149
      %p158 = scmp.eq.s32.totalorder %s23, 7
      %p159 = por %p157, %p158
      %p160 = scmp.ne.s32.totalorder %s149, %s150
      %p161 = scmp.eq.s32.totalorder %s23, 0
      %p162 = por %p160, %p161
      %p163 = scmp.ne.s32.totalorder %s149, %s150
      %p164 = scmp.eq.s32.totalorder %s24, 7
      %p165 = por %p163, %p164
      %p167 = scmp.ne.s32.totalorder %s150, %s166
      %p168 = scmp.eq.s32.totalorder %s24, 0
      %p169 = por %p167, %p168
      %p170 = scmp.le.s32.totalorder 1, %s18
      %p171 = scmp.lt.s32.totalorder %s18, 9
      %p172 = pnand %p170, %p171
      %p173 = pneg %p172
      // Predicated region
      $region9: #{tpu_custom_call.1} parent=5 // pred_check
        _
      $region10: #{tpu_custom_call.1} parent=5 // pred_check_branch
        %175 = sbr.rel (%p172) target = $region12
      $region11: #{tpu_custom_call.1} parent=5 // pred_region
        %s176 = ssub.s32 %s18, 1
      $region12: #{tpu_custom_call.1} parent=5 // pred_fallthru
        _
      %p177 = scmp.lt.s32.totalorder %s18, 8
      // Predicated region
      $region13: #{tpu_custom_call.1} parent=5 // pred_check
        %p178 = pneg %p177
      $region14: #{tpu_custom_call.1} parent=5 // pred_check_branch
        %180 = sbr.rel (%p178) target = $region16
      $region15: #{tpu_custom_call.1} parent=5 // pred_region
        // Predicated region
        $region17: #{tpu_custom_call.1} parent=15 // pred_check
          %p181 = pneg %p68
        $region18: #{tpu_custom_call.1} parent=15 // pred_check_branch
          %183 = sbr.rel (%p181) target = $region20
        $region19: #{tpu_custom_call.1} parent=15 // pred_region
          %s184 = smul.u32 16, %s27
          %p185 = scmp.lt.s32.totalorder %s26, 1
          %s186 = scalar_select %p185, %s26, 1
          %p187 = scmp.lt.s32.totalorder %s25, 3
          %s188 = scalar_select %p187, %s25, 3
          %p189 = scmp.lt.s32.totalorder %s184, 15
          %s190 = scalar_select %p189, %s184, 15
          %s191 = smul.addr %s188, 16
          %s192 = sadd.s32 %s190, %s191
          %s193 = smul.addr %s186, 64
          %s194 = sadd.s32 %s192, %s193
          %s195 = smul.addr %s194, 8
          %s196 = scalar_lea.vmem %s0, %s195
          %s197 = smul.u32 16, %s27
        $region20: #{tpu_custom_call.1} parent=15 // pred_fallthru
          _
        // Predicated region
        $region21: #{tpu_custom_call.1} parent=15 // pred_check
          %p198 = pneg %p94
        $region22: #{tpu_custom_call.1} parent=15 // pred_check_branch
          %200 = sbr.rel (%p198) target = $region24
        $region23: #{tpu_custom_call.1} parent=15 // pred_region
          %s201 = sand.u32 %s84, 1
          %s202 = scalar_lea.sflag [#allocation4], %s201
          %s203 = sand.u32 %s84, 1
          %s204 = smul.addr %s203, 8
          %s205 = scalar_lea.vmem [#allocation3], %s204
          %s207 = ssub.s32 128, 128
          %208 = vsyncadd %s202, %s207
          %s209 = smul.addr %s25, 128
          %s210 = scalar_lea.hbm %s1, %s209
          %s212 = sshll.u32 %s205, 4
          %s213 = int_to_ptr.vmem [resolvable:$true] %s212
          %215 = dma.hbm_to_vmem [thread:$0]  %s210, 128, %s213, %s202
        $region24: #{tpu_custom_call.1} parent=15 // pred_fallthru
          _
        // Predicated region
        $region25: #{tpu_custom_call.1} parent=15 // pred_check
          %p216 = pneg %p124
        $region26: #{tpu_custom_call.1} parent=15 // pred_check_branch
          %218 = sbr.rel (%p216) target = $region28
        $region27: #{tpu_custom_call.1} parent=15 // pred_region
          %s219 = sand.u32 %s114, 1
          %s220 = scalar_lea.sflag [#allocation7], %s219
          %s221 = sand.u32 %s114, 1
          %s222 = smul.addr %s221, 8
          %s223 = scalar_lea.vmem [#allocation6], %s222
          %s225 = ssub.s32 128, 128
          %226 = vsyncadd %s220, %s225
          %s227 = sadd.s32 %s28, %s25
          %s228 = smul.addr %s26, 4
          %s229 = sadd.s32 %s227, %s228
          %s230 = smul.addr %s229, 128
          %s231 = scalar_lea.hbm %s2, %s230
          %s233 = sshll.u32 %s223, 4
          %s234 = int_to_ptr.vmem [resolvable:$true] %s233
          %236 = dma.hbm_to_vmem [thread:$0]  %s231, 128, %s234, %s220
        $region28: #{tpu_custom_call.1} parent=15 // pred_fallthru
          _
      $region16: #{tpu_custom_call.1} parent=5 // pred_fallthru
        _
      %p237 = scmp.le.s32.totalorder 1, %s18
      %p238 = scmp.lt.s32.totalorder %s18, 9
      %p239 = pnand %p237, %p238
      %p240 = pneg %p239
      // Predicated region
      $region29: #{tpu_custom_call.1} parent=5 // pred_check
        _
      $region30: #{tpu_custom_call.1} parent=5 // pred_check_branch
        %242 = sbr.rel (%p239) target = $region32
      $region31: #{tpu_custom_call.1} parent=5 // pred_region
        %s243 = ssub.s32 %s18, 1
        %s244 = sand.u32 %s87, 1
        %s245 = scalar_lea.sflag [#allocation4], %s244
        %s246 = sand.u32 %s87, 1
        %s247 = smul.addr %s246, 8
        %s248 = scalar_lea.vmem [#allocation3], %s247
        // Predicated region
        $region33: #{tpu_custom_call.1} parent=31 // pred_check
          %p249 = pneg %p100
        $region34: #{tpu_custom_call.1} parent=31 // pred_check_branch
          %251 = sbr.rel (%p249) target = $region36
        $region35: #{tpu_custom_call.1} parent=31 // pred_region
          %252 = dma.done %s245, 128
        $region36: #{tpu_custom_call.1} parent=31 // pred_fallthru
          _
        %s253 = sand.u32 %s117, 1
        %s254 = scalar_lea.sflag [#allocation7], %s253
        %s255 = sand.u32 %s117, 1
        %s256 = smul.addr %s255, 8
        %s257 = scalar_lea.vmem [#allocation6], %s256
        // Predicated region
        $region37: #{tpu_custom_call.1} parent=31 // pred_check
          %p258 = pneg %p130
        $region38: #{tpu_custom_call.1} parent=31 // pred_check_branch
          %260 = sbr.rel (%p258) target = $region40
        $region39: #{tpu_custom_call.1} parent=31 // pred_region
          %261 = dma.done %s254, 128
        $region40: #{tpu_custom_call.1} parent=31 // pred_fallthru
          _
        %s262 = smul.u32 16, %s31
        %p263 = scmp.lt.s32.totalorder %s30, 1
        %s264 = scalar_select %p263, %s30, 1
        %p265 = scmp.lt.s32.totalorder %s29, 3
        %s266 = scalar_select %p265, %s29, 3
        %p267 = scmp.lt.s32.totalorder %s262, 15
        %s268 = scalar_select %p267, %s262, 15
        %s269 = smul.addr %s266, 16
        %s270 = sadd.s32 %s268, %s269
        %s271 = smul.addr %s264, 64
        %s272 = sadd.s32 %s270, %s271
        %s273 = smul.addr %s272, 8
        %s274 = scalar_lea.vmem %s0, %s273
        %p275 = pneg %p74
        %p276 = pneg %p71
        %s277 = sand.u32 %s87, 1
        %s278 = scalar_lea.sflag [#allocation4], %s277
        %s279 = sand.u32 %s87, 1
        %s280 = smul.addr %s279, 8
        %s281 = scalar_lea.vmem [#allocation3], %s280
        %p282 = pneg %p100
        %p283 = pneg %p97
        %s284 = sand.u32 %s117, 1
        %s285 = scalar_lea.sflag [#allocation7], %s284
        %s286 = sand.u32 %s117, 1
        %s287 = smul.addr %s286, 8
        %s288 = scalar_lea.vmem [#allocation6], %s287
        %p289 = pneg %p130
        %p290 = pneg %p127
        %p291 = pneg %p162
        %p292 = pneg %p159
        %s293 = sand.u32 %s149, 1
        %s294 = scalar_lea.sflag [#allocation5], %s293
        %s295 = sand.u32 %s149, 1
        %s296 = smul.addr %s295, 1024
        %s297 = scalar_lea.vmem [#allocation8], %s296
        %s298 = smul.u32 16, %s31
        %p299 = scmp.lt.s32.totalorder %s30, 1
        %s300 = scalar_select %p299, %s30, 1
        %p301 = scmp.lt.s32.totalorder %s29, 3
        %s302 = scalar_select %p301, %s29, 3
        %p303 = scmp.lt.s32.totalorder %s298, 15
        %s304 = scalar_select %p303, %s298, 15
        %s305 = smul.addr %s302, 16
        %s306 = sadd.s32 %s304, %s305
        %s307 = smul.addr %s300, 64
        %s308 = sadd.s32 %s306, %s307
        %s309 = smul.addr %s308, 8
        %s310 = scalar_lea.vmem %s0, %s309
        %s311 = smul.u32 16, %s31
        %s312 = smul.u32 16, %s31
        %p313 = scmp.eq.s32.totalorder %s32, 0
        // Predicated region
        $region41: #{tpu_custom_call.1} parent=31 // pred_check
          %p314 = pneg %p313
        $region42: #{tpu_custom_call.1} parent=31 // pred_check_branch
          %316 = sbr.rel (%p314) target = $region44
        $region43: #{tpu_custom_call.1} parent=31 // pred_region
          %v317 = vld [vmem:[%s310] sm:$0xff]
          %v318 = vld [vmem:[%s310 + $0x8] sm:$0xff]
          %v319 = vld [vmem:[%s310 + $0x10] sm:$0xff]
          %v320 = vld [vmem:[%s310 + $0x18] sm:$0xff]
          %v321 = vld [vmem:[%s310 + $0x20] sm:$0xff]
          %v322 = vld [vmem:[%s310 + $0x28] sm:$0xff]
          %v323 = vld [vmem:[%s310 + $0x30] sm:$0xff]
          %v324 = vld [vmem:[%s310 + $0x38] sm:$0xff]
          %v325 = vld [vmem:[%s310 + $0x40] sm:$0xff]
          %v326 = vld [vmem:[%s310 + $0x48] sm:$0xff]
          %v327 = vld [vmem:[%s310 + $0x50] sm:$0xff]
          %v328 = vld [vmem:[%s310 + $0x58] sm:$0xff]
          %v329 = vld [vmem:[%s310 + $0x60] sm:$0xff]
          %v330 = vld [vmem:[%s310 + $0x68] sm:$0xff]
          %v331 = vld [vmem:[%s310 + $0x70] sm:$0xff]
          %v332 = vld [vmem:[%s310 + $0x78] sm:$0xff]
          %v333 = vld [vmem:[%s248] sm:$0xff]
          %vm334 = vcmask 64512
          %v336 = vsel %vm334, %v317, 0
          %v339 = vsel %vm334, %v318, 0
          %v342 = vsel %vm334, %v319, 0
          %v345 = vsel %vm334, %v320, 0
          %v348 = vsel %vm334, %v321, 0
          %v351 = vsel %vm334, %v322, 0
          %v354 = vsel %vm334, %v323, 0
          %v357 = vsel %vm334, %v324, 0
          %v360 = vsel %vm334, %v325, 0
          %v363 = vsel %vm334, %v326, 0
          %v366 = vsel %vm334, %v327, 0
          %v369 = vsel %vm334, %v328, 0
          %v372 = vsel %vm334, %v329, 0
          %v375 = vsel %vm334, %v330, 0
          %v378 = vsel %vm334, %v331, 0
          %v381 = vsel %vm334, %v332, 0
          %383 = vmatprep.subr.mxu0 0.0
          %384 = vmatpush1.msra.mxu0 %v333
          %385 = vmatprep.subr.mxu0 0.0
          %386 = vmatpush1.msra.mxu0 0.0
          %387 = vmatprep.subr.mxu0 0.0
          %388 = vmatpush1.msra.mxu0 0.0
          %389 = vmatprep.subr.mxu0 0.0
          %390 = vmatpush1.msra.mxu0 0.0
          %391 = vmatprep.subr.mxu0 0.0
          %392 = vmatpush1.msra.mxu0 0.0
          %393 = vmatprep.subr.mxu0 0.0
          %394 = vmatpush1.msra.mxu0 0.0
          %395 = vmatprep.subr.mxu0 0.0
          %396 = vmatpush1.msra.mxu0 0.0
          %397 = vmatprep.subr.mxu0 0.0
          %398 = vmatpush1.msra.mxu0 0.0
          %399 = vmatprep.subr.mxu0 0.0
          %400 = vmatpush1.msra.mxu0 0.0
          %401 = vmatprep.subr.mxu0 0.0
          %402 = vmatpush1.msra.mxu0 0.0
          %403 = vmatprep.subr.mxu0 0.0
          %404 = vmatpush1.msra.mxu0 0.0
          %405 = vmatprep.subr.mxu0 0.0
          %406 = vmatpush1.msra.mxu0 0.0
          %407 = vmatprep.subr.mxu0 0.0
          %408 = vmatpush1.msra.mxu0 0.0
          %409 = vmatprep.subr.mxu0 0.0
          %410 = vmatpush1.msra.mxu0 0.0
          %411 = vmatprep.subr.mxu0 0.0
          %412 = vmatpush1.msra.mxu0 0.0
          %413 = vmatprep.subr.mxu0 0.0
          %414 = vmatpush1.msra.mxu0 0.0
          %415 = vmatprep.subr.mxu0 0.0
          %416 = vmatpush1.msra.mxu0 0.0
          %417 = vmatprep.subr.mxu0 0.0
          %418 = vmatpush1.msra.mxu0 0.0
          %419 = vmatprep.subr.mxu0 0.0
          %420 = vmatpush1.msra.mxu0 0.0
          %421 = vmatprep.subr.mxu0 0.0
          %422 = vmatpush1.msra.mxu0 0.0
          %423 = vmatprep.subr.mxu0 0.0
          %424 = vmatpush1.msra.mxu0 0.0
          %425 = vmatprep.subr.mxu0 0.0
          %426 = vmatpush1.msra.mxu0 0.0
          %427 = vmatprep.subr.mxu0 0.0
          %428 = vmatpush1.msra.mxu0 0.0
          %429 = vmatprep.subr.mxu0 0.0
          %430 = vmatpush1.msra.mxu0 0.0
          %431 = vmatprep.subr.mxu0 0.0
          %432 = vmatpush1.msra.mxu0 0.0
          %433 = vmatprep.subr.mxu0 0.0
          %434 = vmatpush1.msra.mxu0 0.0
          %435 = vmatprep.subr.mxu0 0.0
          %436 = vmatpush1.msra.mxu0 0.0
          %437 = vmatprep.subr.mxu0 0.0
          %438 = vmatpush1.msra.mxu0 0.0
          %439 = vmatprep.subr.mxu0 0.0
          %440 = vmatpush1.msra.mxu0 0.0
          %441 = vmatprep.subr.mxu0 0.0
          %442 = vmatpush1.msra.mxu0 0.0
          %443 = vmatprep.subr.mxu0 0.0
          %444 = vmatpush1.msra.mxu0 0.0
          %445 = vmatprep.subr.mxu0 0.0
          %446 = vmatpush1.msra.mxu0 0.0
          %447 = vmatprep.mubr.f32.mxu0 0.0
          %448 = vmatmul.mubr.f32.gmra.mrb[0].mxu0 %v336
          %v449 = vpop.f32.mrb[0].mxu0
          %v450 = vadd.f32 0.0, %v449
          %v451 = vpop.f32.mrb[0].mxu0
          %452 = vmatprep.mubr.f32.mxu0 0.0
          %453 = vmatmul.mubr.f32.gmra.mrb[0].mxu0 %v339
          %v454 = vpop.f32.mrb[0].mxu0
          %v455 = vadd.f32 0.0, %v454
          %v456 = vpop.f32.mrb[0].mxu0
          %457 = vmatprep.mubr.f32.mxu0 0.0
          %458 = vmatmul.mubr.f32.gmra.mrb[0].mxu0 %v342
          %v459 = vpop.f32.mrb[0].mxu0
          %v460 = vadd.f32 0.0, %v459
          %v461 = vpop.f32.mrb[0].mxu0
          %462 = vmatprep.mubr.f32.mxu0 0.0
          %463 = vmatmul.mubr.f32.gmra.mrb[0].mxu0 %v345
          %v464 = vpop.f32.mrb[0].mxu0
          %v465 = vadd.f32 0.0, %v464
          %v466 = vpop.f32.mrb[0].mxu0
          %467 = vmatprep.mubr.f32.mxu0 0.0
          %468 = vmatmul.mubr.f32.gmra.mrb[0].mxu0 %v348
          %v469 = vpop.f32.mrb[0].mxu0
          %v470 = vadd.f32 0.0, %v469
          %v471 = vpop.f32.mrb[0].mxu0
          %472 = vmatprep.mubr.f32.mxu0 0.0
          %473 = vmatmul.mubr.f32.gmra.mrb[0].mxu0 %v351
          %v474 = vpop.f32.mrb[0].mxu0
          %v475 = vadd.f32 0.0, %v474
          %v476 = vpop.f32.mrb[0].mxu0
          %477 = vmatprep.mubr.f32.mxu0 0.0
          %478 = vmatmul.mubr.f32.gmra.mrb[0].mxu0 %v354
          %v479 = vpop.f32.mrb[0].mxu0
          %v480 = vadd.f32 0.0, %v479
          %v481 = vpop.f32.mrb[0].mxu0
          %482 = vmatprep.mubr.f32.mxu0 0.0
          %483 = vmatmul.mubr.f32.gmra.mrb[0].mxu0 %v357
          %v484 = vpop.f32.mrb[0].mxu0
          %v485 = vadd.f32 0.0, %v484
          %v486 = vpop.f32.mrb[0].mxu0
          %487 = vmatprep.mubr.f32.mxu0 0.0
          %488 = vmatmul.mubr.f32.gmra.mrb[0].mxu0 %v360
          %v489 = vpop.f32.mrb[0].mxu0
          %v490 = vadd.f32 0.0, %v489
          %v491 = vpop.f32.mrb[0].mxu0
          %492 = vmatprep.mubr.f32.mxu0 0.0
          %493 = vmatmul.mubr.f32.gmra.mrb[0].mxu0 %v363
          %v494 = vpop.f32.mrb[0].mxu0
          %v495 = vadd.f32 0.0, %v494
          %v496 = vpop.f32.mrb[0].mxu0
          %497 = vmatprep.mubr.f32.mxu0 0.0
          %498 = vmatmul.mubr.f32.gmra.mrb[0].mxu0 %v366
          %v499 = vpop.f32.mrb[0].mxu0
          %v500 = vadd.f32 0.0, %v499
          %v501 = vpop.f32.mrb[0].mxu0
          %502 = vmatprep.mubr.f32.mxu0 0.0
          %503 = vmatmul.mubr.f32.gmra.mrb[0].mxu0 %v369
          %v504 = vpop.f32.mrb[0].mxu0
          %v505 = vadd.f32 0.0, %v504
          %v506 = vpop.f32.mrb[0].mxu0
          %507 = vmatprep.mubr.f32.mxu0 0.0
          %508 = vmatmul.mubr.f32.gmra.mrb[0].mxu0 %v372
          %v509 = vpop.f32.mrb[0].mxu0
          %v510 = vadd.f32 0.0, %v509
          %v511 = vpop.f32.mrb[0].mxu0
          %512 = vmatprep.mubr.f32.mxu0 0.0
          %513 = vmatmul.mubr.f32.gmra.mrb[0].mxu0 %v375
          %v514 = vpop.f32.mrb[0].mxu0
          %v515 = vadd.f32 0.0, %v514
          %v516 = vpop.f32.mrb[0].mxu0
          %517 = vmatprep.mubr.f32.mxu0 0.0
          %518 = vmatmul.mubr.f32.gmra.mrb[0].mxu0 %v378
          %v519 = vpop.f32.mrb[0].mxu0
          %v520 = vadd.f32 0.0, %v519
          %v521 = vpop.f32.mrb[0].mxu0
          %522 = vmatprep.mubr.f32.mxu0 0.0
          %523 = vmatmul.mubr.f32.gmra.mrb[0].mxu0 %v381
          %v524 = vpop.f32.mrb[0].mxu0
          %v525 = vadd.f32 0.0, %v524
          %v526 = vpop.f32.mrb[0].mxu0
          %527 = vdwg.mxu0
          %vm528 = vcmask 523264
          %529 = vst.msk [vmem:[#allocation2] sm:$0xff] %vm528, %v450
          %530 = vst.msk [vmem:[#allocation2 + $0x8] sm:$0xff] %vm528, %v455
          %531 = vst.msk [vmem:[#allocation2 + $0x10] sm:$0xff] %vm528, %v460
          %532 = vst.msk [vmem:[#allocation2 + $0x18] sm:$0xff] %vm528, %v465
          %533 = vst.msk [vmem:[#allocation2 + $0x20] sm:$0xff] %vm528, %v470
          %534 = vst.msk [vmem:[#allocation2 + $0x28] sm:$0xff] %vm528, %v475
          %535 = vst.msk [vmem:[#allocation2 + $0x30] sm:$0xff] %vm528, %v480
          %536 = vst.msk [vmem:[#allocation2 + $0x38] sm:$0xff] %vm528, %v485
          %537 = vst.msk [vmem:[#allocation2 + $0x40] sm:$0xff] %vm528, %v490
          %538 = vst.msk [vmem:[#allocation2 + $0x48] sm:$0xff] %vm528, %v495
          %539 = vst.msk [vmem:[#allocation2 + $0x50] sm:$0xff] %vm528, %v500
          %540 = vst.msk [vmem:[#allocation2 + $0x58] sm:$0xff] %vm528, %v505
          %541 = vst.msk [vmem:[#allocation2 + $0x60] sm:$0xff] %vm528, %v510
          %542 = vst.msk [vmem:[#allocation2 + $0x68] sm:$0xff] %vm528, %v515
          %543 = vst.msk [vmem:[#allocation2 + $0x70] sm:$0xff] %vm528, %v520
          %544 = vst.msk [vmem:[#allocation2 + $0x78] sm:$0xff] %vm528, %v525
        $region44: #{tpu_custom_call.1} parent=31 // pred_fallthru
          _
        %v545 = vld [vmem:[%s257] sm:$0xff]
        %v546 = vld [vmem:[#allocation2] sm:$0xff]
        %v547 = vld [vmem:[#allocation2 + $0x8] sm:$0xff]
        %v548 = vld [vmem:[#allocation2 + $0x10] sm:$0xff]
        %v549 = vld [vmem:[#allocation2 + $0x18] sm:$0xff]
        %v550 = vld [vmem:[#allocation2 + $0x20] sm:$0xff]
        %v551 = vld [vmem:[#allocation2 + $0x28] sm:$0xff]
        %v552 = vld [vmem:[#allocation2 + $0x30] sm:$0xff]
        %v553 = vld [vmem:[#allocation2 + $0x38] sm:$0xff]
        %v554 = vld [vmem:[#allocation2 + $0x40] sm:$0xff]
        %v555 = vld [vmem:[#allocation2 + $0x48] sm:$0xff]
        %v556 = vld [vmem:[#allocation2 + $0x50] sm:$0xff]
        %v557 = vld [vmem:[#allocation2 + $0x58] sm:$0xff]
        %v558 = vld [vmem:[#allocation2 + $0x60] sm:$0xff]
        %v559 = vld [vmem:[#allocation2 + $0x68] sm:$0xff]
        %v560 = vld [vmem:[#allocation2 + $0x70] sm:$0xff]
        %v561 = vld [vmem:[#allocation2 + $0x78] sm:$0xff]
        %vm562 = vcmask 64512
        %v564 = vsel %vm562, %v546, 0
        %v567 = vsel %vm562, %v547, 0
        %v570 = vsel %vm562, %v548, 0
        %v573 = vsel %vm562, %v549, 0
        %v576 = vsel %vm562, %v550, 0
        %v579 = vsel %vm562, %v551, 0
        %v582 = vsel %vm562, %v552, 0
        %v585 = vsel %vm562, %v553, 0
        %v588 = vsel %vm562, %v554, 0
        %v591 = vsel %vm562, %v555, 0
        %v594 = vsel %vm562, %v556, 0
        %v597 = vsel %vm562, %v557, 0
        %v600 = vsel %vm562, %v558, 0
        %v603 = vsel %vm562, %v559, 0
        %v606 = vsel %vm562, %v560, 0
        %v609 = vsel %vm562, %v561, 0
        %611 = vmatprep.subr.mxu0 0.0
        %612 = vmatpush1.msra.mxu0 %v545
        %613 = vmatprep.subr.mxu0 0.0
        %614 = vmatpush1.msra.mxu0 0.0
        %615 = vmatprep.subr.mxu0 0.0
        %616 = vmatpush1.msra.mxu0 0.0
        %617 = vmatprep.subr.mxu0 0.0
        %618 = vmatpush1.msra.mxu0 0.0
        %619 = vmatprep.subr.mxu0 0.0
        %620 = vmatpush1.msra.mxu0 0.0
        %621 = vmatprep.subr.mxu0 0.0
        %622 = vmatpush1.msra.mxu0 0.0
        %623 = vmatprep.subr.mxu0 0.0
        %624 = vmatpush1.msra.mxu0 0.0
        %625 = vmatprep.subr.mxu0 0.0
        %626 = vmatpush1.msra.mxu0 0.0
        %627 = vmatprep.subr.mxu0 0.0
        %628 = vmatpush1.msra.mxu0 0.0
        %629 = vmatprep.subr.mxu0 0.0
        %630 = vmatpush1.msra.mxu0 0.0
        %631 = vmatprep.subr.mxu0 0.0
        %632 = vmatpush1.msra.mxu0 0.0
        %633 = vmatprep.subr.mxu0 0.0
        %634 = vmatpush1.msra.mxu0 0.0
        %635 = vmatprep.subr.mxu0 0.0
        %636 = vmatpush1.msra.mxu0 0.0
        %637 = vmatprep.subr.mxu0 0.0
        %638 = vmatpush1.msra.mxu0 0.0
        %639 = vmatprep.subr.mxu0 0.0
        %640 = vmatpush1.msra.mxu0 0.0
        %641 = vmatprep.subr.mxu0 0.0
        %642 = vmatpush1.msra.mxu0 0.0
        %643 = vmatprep.subr.mxu0 0.0
        %644 = vmatpush1.msra.mxu0 0.0
        %645 = vmatprep.subr.mxu0 0.0
        %646 = vmatpush1.msra.mxu0 0.0
        %647 = vmatprep.subr.mxu0 0.0
        %648 = vmatpush1.msra.mxu0 0.0
        %649 = vmatprep.subr.mxu0 0.0
        %650 = vmatpush1.msra.mxu0 0.0
        %651 = vmatprep.subr.mxu0 0.0
        %652 = vmatpush1.msra.mxu0 0.0
        %653 = vmatprep.subr.mxu0 0.0
        %654 = vmatpush1.msra.mxu0 0.0
        %655 = vmatprep.subr.mxu0 0.0
        %656 = vmatpush1.msra.mxu0 0.0
        %657 = vmatprep.subr.mxu0 0.0
        %658 = vmatpush1.msra.mxu0 0.0
        %659 = vmatprep.subr.mxu0 0.0
        %660 = vmatpush1.msra.mxu0 0.0
        %661 = vmatprep.subr.mxu0 0.0
        %662 = vmatpush1.msra.mxu0 0.0
        %663 = vmatprep.subr.mxu0 0.0
        %664 = vmatpush1.msra.mxu0 0.0
        %665 = vmatprep.subr.mxu0 0.0
        %666 = vmatpush1.msra.mxu0 0.0
        %667 = vmatprep.subr.mxu0 0.0
        %668 = vmatpush1.msra.mxu0 0.0
        %669 = vmatprep.subr.mxu0 0.0
        %670 = vmatpush1.msra.mxu0 0.0
        %671 = vmatprep.subr.mxu0 0.0
        %672 = vmatpush1.msra.mxu0 0.0
        %673 = vmatprep.subr.mxu0 0.0
        %674 = vmatpush1.msra.mxu0 0.0
        %675 = vmatprep.mubr.f32.mxu0 0.0
        %676 = vmatmul.mubr.f32.gmra.mrb[0].mxu0 %v564
        %v677 = vpop.f32.mrb[0].mxu0
        %v678 = vadd.f32 0.0, %v677
        %v679 = vpop.f32.mrb[0].mxu0
        %680 = vmatprep.mubr.f32.mxu0 0.0
        %681 = vmatmul.mubr.f32.gmra.mrb[0].mxu0 %v567
        %v682 = vpop.f32.mrb[0].mxu0
        %v683 = vadd.f32 0.0, %v682
        %v684 = vpop.f32.mrb[0].mxu0
        %685 = vmatprep.mubr.f32.mxu0 0.0
        %686 = vmatmul.mubr.f32.gmra.mrb[0].mxu0 %v570
        %v687 = vpop.f32.mrb[0].mxu0
        %v688 = vadd.f32 0.0, %v687
        %v689 = vpop.f32.mrb[0].mxu0
        %690 = vmatprep.mubr.f32.mxu0 0.0
        %691 = vmatmul.mubr.f32.gmra.mrb[0].mxu0 %v573
        %v692 = vpop.f32.mrb[0].mxu0
        %v693 = vadd.f32 0.0, %v692
        %v694 = vpop.f32.mrb[0].mxu0
        %695 = vmatprep.mubr.f32.mxu0 0.0
        %696 = vmatmul.mubr.f32.gmra.mrb[0].mxu0 %v576
        %v697 = vpop.f32.mrb[0].mxu0
        %v698 = vadd.f32 0.0, %v697
        %v699 = vpop.f32.mrb[0].mxu0
        %700 = vmatprep.mubr.f32.mxu0 0.0
        %701 = vmatmul.mubr.f32.gmra.mrb[0].mxu0 %v579
        %v702 = vpop.f32.mrb[0].mxu0
        %v703 = vadd.f32 0.0, %v702
        %v704 = vpop.f32.mrb[0].mxu0
        %705 = vmatprep.mubr.f32.mxu0 0.0
        %706 = vmatmul.mubr.f32.gmra.mrb[0].mxu0 %v582
        %v707 = vpop.f32.mrb[0].mxu0
        %v708 = vadd.f32 0.0, %v707
        %v709 = vpop.f32.mrb[0].mxu0
        %710 = vmatprep.mubr.f32.mxu0 0.0
        %711 = vmatmul.mubr.f32.gmra.mrb[0].mxu0 %v585
        %v712 = vpop.f32.mrb[0].mxu0
        %v713 = vadd.f32 0.0, %v712
        %v714 = vpop.f32.mrb[0].mxu0
        %715 = vmatprep.mubr.f32.mxu0 0.0
        %716 = vmatmul.mubr.f32.gmra.mrb[0].mxu0 %v588
        %v717 = vpop.f32.mrb[0].mxu0
        %v718 = vadd.f32 0.0, %v717
        %v719 = vpop.f32.mrb[0].mxu0
        %720 = vmatprep.mubr.f32.mxu0 0.0
        %721 = vmatmul.mubr.f32.gmra.mrb[0].mxu0 %v591
        %v722 = vpop.f32.mrb[0].mxu0
        %v723 = vadd.f32 0.0, %v722
        %v724 = vpop.f32.mrb[0].mxu0
        %725 = vmatprep.mubr.f32.mxu0 0.0
        %726 = vmatmul.mubr.f32.gmra.mrb[0].mxu0 %v594
        %v727 = vpop.f32.mrb[0].mxu0
        %v728 = vadd.f32 0.0, %v727
        %v729 = vpop.f32.mrb[0].mxu0
        %730 = vmatprep.mubr.f32.mxu0 0.0
        %731 = vmatmul.mubr.f32.gmra.mrb[0].mxu0 %v597
        %v732 = vpop.f32.mrb[0].mxu0
        %v733 = vadd.f32 0.0, %v732
        %v734 = vpop.f32.mrb[0].mxu0
        %735 = vmatprep.mubr.f32.mxu0 0.0
        %736 = vmatmul.mubr.f32.gmra.mrb[0].mxu0 %v600
        %v737 = vpop.f32.mrb[0].mxu0
        %v738 = vadd.f32 0.0, %v737
        %v739 = vpop.f32.mrb[0].mxu0
        %740 = vmatprep.mubr.f32.mxu0 0.0
        %741 = vmatmul.mubr.f32.gmra.mrb[0].mxu0 %v603
        %v742 = vpop.f32.mrb[0].mxu0
        %v743 = vadd.f32 0.0, %v742
        %v744 = vpop.f32.mrb[0].mxu0
        %745 = vmatprep.mubr.f32.mxu0 0.0
        %746 = vmatmul.mubr.f32.gmra.mrb[0].mxu0 %v606
        %v747 = vpop.f32.mrb[0].mxu0
        %v748 = vadd.f32 0.0, %v747
        %v749 = vpop.f32.mrb[0].mxu0
        %750 = vmatprep.mubr.f32.mxu0 0.0
        %751 = vmatmul.mubr.f32.gmra.mrb[0].mxu0 %v609
        %v752 = vpop.f32.mrb[0].mxu0
        %v753 = vadd.f32 0.0, %v752
        %v754 = vpop.f32.mrb[0].mxu0
        %755 = vdwg.mxu0
        %756 = vst [vmem:[%s297] sm:$0xff] %v678
        %757 = vst [vmem:[%s297 + $0x8] sm:$0xff] %v683
        %758 = vst [vmem:[%s297 + $0x10] sm:$0xff] %v688
        %759 = vst [vmem:[%s297 + $0x18] sm:$0xff] %v693
        %760 = vst [vmem:[%s297 + $0x20] sm:$0xff] %v698
        %761 = vst [vmem:[%s297 + $0x28] sm:$0xff] %v703
        %762 = vst [vmem:[%s297 + $0x30] sm:$0xff] %v708
        %763 = vst [vmem:[%s297 + $0x38] sm:$0xff] %v713
        %764 = vst [vmem:[%s297 + $0x40] sm:$0xff] %v718
        %765 = vst [vmem:[%s297 + $0x48] sm:$0xff] %v723
        %766 = vst [vmem:[%s297 + $0x50] sm:$0xff] %v728
        %767 = vst [vmem:[%s297 + $0x58] sm:$0xff] %v733
        %768 = vst [vmem:[%s297 + $0x60] sm:$0xff] %v738
        %769 = vst [vmem:[%s297 + $0x68] sm:$0xff] %v743
        %770 = vst [vmem:[%s297 + $0x70] sm:$0xff] %v748
        %771 = vst [vmem:[%s297 + $0x78] sm:$0xff] %v753
        %772 = vrot.lane.b32.xlu0 %v546, 120
        %v773 = vpop.permute.xlu0 %772
        %774 = vrot.lane.b32.xlu0 %v547, 120
        %v775 = vpop.permute.xlu0 %774
        %776 = vrot.lane.b32.xlu0 %v548, 120
        %v777 = vpop.permute.xlu0 %776
        %778 = vrot.lane.b32.xlu0 %v549, 120
        %v779 = vpop.permute.xlu0 %778
        %780 = vrot.lane.b32.xlu0 %v550, 120
        %v781 = vpop.permute.xlu0 %780
        %782 = vrot.lane.b32.xlu0 %v551, 120
        %v783 = vpop.permute.xlu0 %782
        %784 = vrot.lane.b32.xlu0 %v552, 120
        %v785 = vpop.permute.xlu0 %784
        %786 = vrot.lane.b32.xlu0 %v553, 120
        %v787 = vpop.permute.xlu0 %786
        %788 = vrot.lane.b32.xlu0 %v554, 120
        %v789 = vpop.permute.xlu0 %788
        %790 = vrot.lane.b32.xlu0 %v555, 120
        %v791 = vpop.permute.xlu0 %790
        %792 = vrot.lane.b32.xlu0 %v556, 120
        %v793 = vpop.permute.xlu0 %792
        %794 = vrot.lane.b32.xlu0 %v557, 120
        %v795 = vpop.permute.xlu0 %794
        %796 = vrot.lane.b32.xlu0 %v558, 120
        %v797 = vpop.permute.xlu0 %796
        %798 = vrot.lane.b32.xlu0 %v559, 120
        %v799 = vpop.permute.xlu0 %798
        %800 = vrot.lane.b32.xlu0 %v560, 120
        %v801 = vpop.permute.xlu0 %800
        %802 = vrot.lane.b32.xlu0 %v561, 120
        %v803 = vpop.permute.xlu0 %802
        %v804 = vsel %vm562, %v773, 0
        %v806 = vsel %vm562, %v775, 0
        %v808 = vsel %vm562, %v777, 0
        %v810 = vsel %vm562, %v779, 0
        %v812 = vsel %vm562, %v781, 0
        %v814 = vsel %vm562, %v783, 0
        %v816 = vsel %vm562, %v785, 0
        %v818 = vsel %vm562, %v787, 0
        %v820 = vsel %vm562, %v789, 0
        %v822 = vsel %vm562, %v791, 0
        %v824 = vsel %vm562, %v793, 0
        %v826 = vsel %vm562, %v795, 0
        %v828 = vsel %vm562, %v797, 0
        %v830 = vsel %vm562, %v799, 0
        %v832 = vsel %vm562, %v801, 0
        %v834 = vsel %vm562, %v803, 0
        %836 = vmatprep.subr.mxu0 0.0
        %837 = vmatpush1.msra.mxu0 %v545
        %838 = vmatprep.subr.mxu0 0.0
        %839 = vmatpush1.msra.mxu0 0.0
        %840 = vmatprep.subr.mxu0 0.0
        %841 = vmatpush1.msra.mxu0 0.0
        %842 = vmatprep.subr.mxu0 0.0
        %843 = vmatpush1.msra.mxu0 0.0
        %844 = vmatprep.subr.mxu0 0.0
        %845 = vmatpush1.msra.mxu0 0.0
        %846 = vmatprep.subr.mxu0 0.0
        %847 = vmatpush1.msra.mxu0 0.0
        %848 = vmatprep.subr.mxu0 0.0
        %849 = vmatpush1.msra.mxu0 0.0
        %850 = vmatprep.subr.mxu0 0.0
        %851 = vmatpush1.msra.mxu0 0.0
        %852 = vmatprep.subr.mxu0 0.0
        %853 = vmatpush1.msra.mxu0 0.0
        %854 = vmatprep.subr.mxu0 0.0
        %855 = vmatpush1.msra.mxu0 0.0
        %856 = vmatprep.subr.mxu0 0.0
        %857 = vmatpush1.msra.mxu0 0.0
        %858 = vmatprep.subr.mxu0 0.0
        %859 = vmatpush1.msra.mxu0 0.0
        %860 = vmatprep.subr.mxu0 0.0
        %861 = vmatpush1.msra.mxu0 0.0
        %862 = vmatprep.subr.mxu0 0.0
        %863 = vmatpush1.msra.mxu0 0.0
        %864 = vmatprep.subr.mxu0 0.0
        %865 = vmatpush1.msra.mxu0 0.0
        %866 = vmatprep.subr.mxu0 0.0
        %867 = vmatpush1.msra.mxu0 0.0
        %868 = vmatprep.subr.mxu0 0.0
        %869 = vmatpush1.msra.mxu0 0.0
        %870 = vmatprep.subr.mxu0 0.0
        %871 = vmatpush1.msra.mxu0 0.0
        %872 = vmatprep.subr.mxu0 0.0
        %873 = vmatpush1.msra.mxu0 0.0
        %874 = vmatprep.subr.mxu0 0.0
        %875 = vmatpush1.msra.mxu0 0.0
        %876 = vmatprep.subr.mxu0 0.0
        %877 = vmatpush1.msra.mxu0 0.0
        %878 = vmatprep.subr.mxu0 0.0
        %879 = vmatpush1.msra.mxu0 0.0
        %880 = vmatprep.subr.mxu0 0.0
        %881 = vmatpush1.msra.mxu0 0.0
        %882 = vmatprep.subr.mxu0 0.0
        %883 = vmatpush1.msra.mxu0 0.0
        %884 = vmatprep.subr.mxu0 0.0
        %885 = vmatpush1.msra.mxu0 0.0
        %886 = vmatprep.subr.mxu0 0.0
        %887 = vmatpush1.msra.mxu0 0.0
        %888 = vmatprep.subr.mxu0 0.0
        %889 = vmatpush1.msra.mxu0 0.0
        %890 = vmatprep.subr.mxu0 0.0
        %891 = vmatpush1.msra.mxu0 0.0
        %892 = vmatprep.subr.mxu0 0.0
        %893 = vmatpush1.msra.mxu0 0.0
        %894 = vmatprep.subr.mxu0 0.0
        %895 = vmatpush1.msra.mxu0 0.0
        %896 = vmatprep.subr.mxu0 0.0
        %897 = vmatpush1.msra.mxu0 0.0
        %898 = vmatprep.subr.mxu0 0.0
        %899 = vmatpush1.msra.mxu0 0.0
        %900 = vmatprep.mubr.f32.mxu0 0.0
        %901 = vmatmul.mubr.f32.gmra.mrb[0].mxu0 %v804
        %v902 = vpop.f32.mrb[0].mxu0
        %v903 = vadd.f32 0.0, %v902
        %v904 = vpop.f32.mrb[0].mxu0
        %905 = vmatprep.mubr.f32.mxu0 0.0
        %906 = vmatmul.mubr.f32.gmra.mrb[0].mxu0 %v806
        %v907 = vpop.f32.mrb[0].mxu0
        %v908 = vadd.f32 0.0, %v907
        %v909 = vpop.f32.mrb[0].mxu0
        %910 = vmatprep.mubr.f32.mxu0 0.0
        %911 = vmatmul.mubr.f32.gmra.mrb[0].mxu0 %v808
        %v912 = vpop.f32.mrb[0].mxu0
        %v913 = vadd.f32 0.0, %v912
        %v914 = vpop.f32.mrb[0].mxu0
        %915 = vmatprep.mubr.f32.mxu0 0.0
        %916 = vmatmul.mubr.f32.gmra.mrb[0].mxu0 %v810
        %v917 = vpop.f32.mrb[0].mxu0
        %v918 = vadd.f32 0.0, %v917
        %v919 = vpop.f32.mrb[0].mxu0
        %920 = vmatprep.mubr.f32.mxu0 0.0
        %921 = vmatmul.mubr.f32.gmra.mrb[0].mxu0 %v812
        %v922 = vpop.f32.mrb[0].mxu0
        %v923 = vadd.f32 0.0, %v922
        %v924 = vpop.f32.mrb[0].mxu0
        %925 = vmatprep.mubr.f32.mxu0 0.0
        %926 = vmatmul.mubr.f32.gmra.mrb[0].mxu0 %v814
        %v927 = vpop.f32.mrb[0].mxu0
        %v928 = vadd.f32 0.0, %v927
        %v929 = vpop.f32.mrb[0].mxu0
        %930 = vmatprep.mubr.f32.mxu0 0.0
        %931 = vmatmul.mubr.f32.gmra.mrb[0].mxu0 %v816
        %v932 = vpop.f32.mrb[0].mxu0
        %v933 = vadd.f32 0.0, %v932
        %v934 = vpop.f32.mrb[0].mxu0
        %935 = vmatprep.mubr.f32.mxu0 0.0
        %936 = vmatmul.mubr.f32.gmra.mrb[0].mxu0 %v818
        %v937 = vpop.f32.mrb[0].mxu0
        %v938 = vadd.f32 0.0, %v937
        %v939 = vpop.f32.mrb[0].mxu0
        %940 = vmatprep.mubr.f32.mxu0 0.0
        %941 = vmatmul.mubr.f32.gmra.mrb[0].mxu0 %v820
        %v942 = vpop.f32.mrb[0].mxu0
        %v943 = vadd.f32 0.0, %v942
        %v944 = vpop.f32.mrb[0].mxu0
        %945 = vmatprep.mubr.f32.mxu0 0.0
        %946 = vmatmul.mubr.f32.gmra.mrb[0].mxu0 %v822
        %v947 = vpop.f32.mrb[0].mxu0
        %v948 = vadd.f32 0.0, %v947
        %v949 = vpop.f32.mrb[0].mxu0
        %950 = vmatprep.mubr.f32.mxu0 0.0
        %951 = vmatmul.mubr.f32.gmra.mrb[0].mxu0 %v824
        %v952 = vpop.f32.mrb[0].mxu0
        %v953 = vadd.f32 0.0, %v952
        %v954 = vpop.f32.mrb[0].mxu0
        %955 = vmatprep.mubr.f32.mxu0 0.0
        %956 = vmatmul.mubr.f32.gmra.mrb[0].mxu0 %v826
        %v957 = vpop.f32.mrb[0].mxu0
        %v958 = vadd.f32 0.0, %v957
        %v959 = vpop.f32.mrb[0].mxu0
        %960 = vmatprep.mubr.f32.mxu0 0.0
        %961 = vmatmul.mubr.f32.gmra.mrb[0].mxu0 %v828
        %v962 = vpop.f32.mrb[0].mxu0
        %v963 = vadd.f32 0.0, %v962
        %v964 = vpop.f32.mrb[0].mxu0
        %965 = vmatprep.mubr.f32.mxu0 0.0
        %966 = vmatmul.mubr.f32.gmra.mrb[0].mxu0 %v830
        %v967 = vpop.f32.mrb[0].mxu0
        %v968 = vadd.f32 0.0, %v967
        %v969 = vpop.f32.mrb[0].mxu0
        %970 = vmatprep.mubr.f32.mxu0 0.0
        %971 = vmatmul.mubr.f32.gmra.mrb[0].mxu0 %v832
        %v972 = vpop.f32.mrb[0].mxu0
        %v973 = vadd.f32 0.0, %v972
        %v974 = vpop.f32.mrb[0].mxu0
        %975 = vmatprep.mubr.f32.mxu0 0.0
        %976 = vmatmul.mubr.f32.gmra.mrb[0].mxu0 %v834
        %v977 = vpop.f32.mrb[0].mxu0
        %v978 = vadd.f32 0.0, %v977
        %v979 = vpop.f32.mrb[0].mxu0
        %980 = vdwg.mxu0
        %s981 = scalar_lea.vmem %s297, 128 [#allocation8]
        %982 = vst [vmem:[%s981] sm:$0xff] %v903
        %983 = vst [vmem:[%s981 + $0x8] sm:$0xff] %v908
        %984 = vst [vmem:[%s981 + $0x10] sm:$0xff] %v913
        %985 = vst [vmem:[%s981 + $0x18] sm:$0xff] %v918
        %986 = vst [vmem:[%s981 + $0x20] sm:$0xff] %v923
        %987 = vst [vmem:[%s981 + $0x28] sm:$0xff] %v928
        %988 = vst [vmem:[%s981 + $0x30] sm:$0xff] %v933
        %989 = vst [vmem:[%s981 + $0x38] sm:$0xff] %v938
        %990 = vst [vmem:[%s981 + $0x40] sm:$0xff] %v943
        %991 = vst [vmem:[%s981 + $0x48] sm:$0xff] %v948
        %992 = vst [vmem:[%s981 + $0x50] sm:$0xff] %v953
        %993 = vst [vmem:[%s981 + $0x58] sm:$0xff] %v958
        %994 = vst [vmem:[%s981 + $0x60] sm:$0xff] %v963
        %995 = vst [vmem:[%s981 + $0x68] sm:$0xff] %v968
        %996 = vst [vmem:[%s981 + $0x70] sm:$0xff] %v973
        %997 = vst [vmem:[%s981 + $0x78] sm:$0xff] %v978
        %998 = vrot.lane.b32.xlu0 %v546, 112
        %v999 = vpop.permute.xlu0 %998
        %1000 = vrot.lane.b32.xlu0 %v547, 112
        %v1001 = vpop.permute.xlu0 %1000
        %1002 = vrot.lane.b32.xlu0 %v548, 112
        %v1003 = vpop.permute.xlu0 %1002
        %1004 = vrot.lane.b32.xlu0 %v549, 112
        %v1005 = vpop.permute.xlu0 %1004
        %1006 = vrot.lane.b32.xlu0 %v550, 112
        %v1007 = vpop.permute.xlu0 %1006
        %1008 = vrot.lane.b32.xlu0 %v551, 112
        %v1009 = vpop.permute.xlu0 %1008
        %1010 = vrot.lane.b32.xlu0 %v552, 112
        %v1011 = vpop.permute.xlu0 %1010
        %1012 = vrot.lane.b32.xlu0 %v553, 112
        %v1013 = vpop.permute.xlu0 %1012
        %1014 = vrot.lane.b32.xlu0 %v554, 112
        %v1015 = vpop.permute.xlu0 %1014
        %1016 = vrot.lane.b32.xlu0 %v555, 112
        %v1017 = vpop.permute.xlu0 %1016
        %1018 = vrot.lane.b32.xlu0 %v556, 112
        %v1019 = vpop.permute.xlu0 %1018
        %1020 = vrot.lane.b32.xlu0 %v557, 112
        %v1021 = vpop.permute.xlu0 %1020
        %1022 = vrot.lane.b32.xlu0 %v558, 112
        %v1023 = vpop.permute.xlu0 %1022
        %1024 = vrot.lane.b32.xlu0 %v559, 112
        %v1025 = vpop.permute.xlu0 %1024
        %1026 = vrot.lane.b32.xlu0 %v560, 112
        %v1027 = vpop.permute.xlu0 %1026
        %1028 = vrot.lane.b32.xlu0 %v561, 112
        %v1029 = vpop.permute.xlu0 %1028
        %v1030 = vsel %vm562, %v999, 0
        %v1032 = vsel %vm562, %v1001, 0
        %v1034 = vsel %vm562, %v1003, 0
        %v1036 = vsel %vm562, %v1005, 0
        %v1038 = vsel %vm562, %v1007, 0
        %v1040 = vsel %vm562, %v1009, 0
        %v1042 = vsel %vm562, %v1011, 0
        %v1044 = vsel %vm562, %v1013, 0
        %v1046 = vsel %vm562, %v1015, 0
        %v1048 = vsel %vm562, %v1017, 0
        %v1050 = vsel %vm562, %v1019, 0
        %v1052 = vsel %vm562, %v1021, 0
        %v1054 = vsel %vm562, %v1023, 0
        %v1056 = vsel %vm562, %v1025, 0
        %v1058 = vsel %vm562, %v1027, 0
        %v1060 = vsel %vm562, %v1029, 0
        %1062 = vmatprep.subr.mxu0 0.0
        %1063 = vmatpush1.msra.mxu0 %v545
        %1064 = vmatprep.subr.mxu0 0.0
        %1065 = vmatpush1.msra.mxu0 0.0
        %1066 = vmatprep.subr.mxu0 0.0
        %1067 = vmatpush1.msra.mxu0 0.0
        %1068 = vmatprep.subr.mxu0 0.0
        %1069 = vmatpush1.msra.mxu0 0.0
        %1070 = vmatprep.subr.mxu0 0.0
        %1071 = vmatpush1.msra.mxu0 0.0
        %1072 = vmatprep.subr.mxu0 0.0
        %1073 = vmatpush1.msra.mxu0 0.0
        %1074 = vmatprep.subr.mxu0 0.0
        %1075 = vmatpush1.msra.mxu0 0.0
        %1076 = vmatprep.subr.mxu0 0.0
        %1077 = vmatpush1.msra.mxu0 0.0
        %1078 = vmatprep.subr.mxu0 0.0
        %1079 = vmatpush1.msra.mxu0 0.0
        %1080 = vmatprep.subr.mxu0 0.0
        %1081 = vmatpush1.msra.mxu0 0.0
        %1082 = vmatprep.subr.mxu0 0.0
        %1083 = vmatpush1.msra.mxu0 0.0
        %1084 = vmatprep.subr.mxu0 0.0
        %1085 = vmatpush1.msra.mxu0 0.0
        %1086 = vmatprep.subr.mxu0 0.0
        %1087 = vmatpush1.msra.mxu0 0.0
        %1088 = vmatprep.subr.mxu0 0.0
        %1089 = vmatpush1.msra.mxu0 0.0
        %1090 = vmatprep.subr.mxu0 0.0
        %1091 = vmatpush1.msra.mxu0 0.0
        %1092 = vmatprep.subr.mxu0 0.0
        %1093 = vmatpush1.msra.mxu0 0.0
        %1094 = vmatprep.subr.mxu0 0.0
        %1095 = vmatpush1.msra.mxu0 0.0
        %1096 = vmatprep.subr.mxu0 0.0
        %1097 = vmatpush1.msra.mxu0 0.0
        %1098 = vmatprep.subr.mxu0 0.0
        %1099 = vmatpush1.msra.mxu0 0.0
        %1100 = vmatprep.subr.mxu0 0.0
        %1101 = vmatpush1.msra.mxu0 0.0
        %1102 = vmatprep.subr.mxu0 0.0
        %1103 = vmatpush1.msra.mxu0 0.0
        %1104 = vmatprep.subr.mxu0 0.0
        %1105 = vmatpush1.msra.mxu0 0.0
        %1106 = vmatprep.subr.mxu0 0.0
        %1107 = vmatpush1.msra.mxu0 0.0
        %1108 = vmatprep.subr.mxu0 0.0
        %1109 = vmatpush1.msra.mxu0 0.0
        %1110 = vmatprep.subr.mxu0 0.0
        %1111 = vmatpush1.msra.mxu0 0.0
        %1112 = vmatprep.subr.mxu0 0.0
        %1113 = vmatpush1.msra.mxu0 0.0
        %1114 = vmatprep.subr.mxu0 0.0
        %1115 = vmatpush1.msra.mxu0 0.0
        %1116 = vmatprep.subr.mxu0 0.0
        %1117 = vmatpush1.msra.mxu0 0.0
        %1118 = vmatprep.subr.mxu0 0.0
        %1119 = vmatpush1.msra.mxu0 0.0
        %1120 = vmatprep.subr.mxu0 0.0
        %1121 = vmatpush1.msra.mxu0 0.0
        %1122 = vmatprep.subr.mxu0 0.0
        %1123 = vmatpush1.msra.mxu0 0.0
        %1124 = vmatprep.subr.mxu0 0.0
        %1125 = vmatpush1.msra.mxu0 0.0
        %1126 = vmatprep.mubr.f32.mxu0 0.0
        %1127 = vmatmul.mubr.f32.gmra.mrb[0].mxu0 %v1030
        %v1128 = vpop.f32.mrb[0].mxu0
        %v1129 = vadd.f32 0.0, %v1128
        %v1130 = vpop.f32.mrb[0].mxu0
        %1131 = vmatprep.mubr.f32.mxu0 0.0
        %1132 = vmatmul.mubr.f32.gmra.mrb[0].mxu0 %v1032
        %v1133 = vpop.f32.mrb[0].mxu0
        %v1134 = vadd.f32 0.0, %v1133
        %v1135 = vpop.f32.mrb[0].mxu0
        %1136 = vmatprep.mubr.f32.mxu0 0.0
        %1137 = vmatmul.mubr.f32.gmra.mrb[0].mxu0 %v1034
        %v1138 = vpop.f32.mrb[0].mxu0
        %v1139 = vadd.f32 0.0, %v1138
        %v1140 = vpop.f32.mrb[0].mxu0
        %1141 = vmatprep.mubr.f32.mxu0 0.0
        %1142 = vmatmul.mubr.f32.gmra.mrb[0].mxu0 %v1036
        %v1143 = vpop.f32.mrb[0].mxu0
        %v1144 = vadd.f32 0.0, %v1143
        %v1145 = vpop.f32.mrb[0].mxu0
        %1146 = vmatprep.mubr.f32.mxu0 0.0
        %1147 = vmatmul.mubr.f32.gmra.mrb[0].mxu0 %v1038
        %v1148 = vpop.f32.mrb[0].mxu0
        %v1149 = vadd.f32 0.0, %v1148
        %v1150 = vpop.f32.mrb[0].mxu0
        %1151 = vmatprep.mubr.f32.mxu0 0.0
        %1152 = vmatmul.mubr.f32.gmra.mrb[0].mxu0 %v1040
        %v1153 = vpop.f32.mrb[0].mxu0
        %v1154 = vadd.f32 0.0, %v1153
        %v1155 = vpop.f32.mrb[0].mxu0
        %1156 = vmatprep.mubr.f32.mxu0 0.0
        %1157 = vmatmul.mubr.f32.gmra.mrb[0].mxu0 %v1042
        %v1158 = vpop.f32.mrb[0].mxu0
        %v1159 = vadd.f32 0.0, %v1158
        %v1160 = vpop.f32.mrb[0].mxu0
        %1161 = vmatprep.mubr.f32.mxu0 0.0
        %1162 = vmatmul.mubr.f32.gmra.mrb[0].mxu0 %v1044
        %v1163 = vpop.f32.mrb[0].mxu0
        %v1164 = vadd.f32 0.0, %v1163
        %v1165 = vpop.f32.mrb[0].mxu0
        %1166 = vmatprep.mubr.f32.mxu0 0.0
        %1167 = vmatmul.mubr.f32.gmra.mrb[0].mxu0 %v1046
        %v1168 = vpop.f32.mrb[0].mxu0
        %v1169 = vadd.f32 0.0, %v1168
        %v1170 = vpop.f32.mrb[0].mxu0
        %1171 = vmatprep.mubr.f32.mxu0 0.0
        %1172 = vmatmul.mubr.f32.gmra.mrb[0].mxu0 %v1048
        %v1173 = vpop.f32.mrb[0].mxu0
        %v1174 = vadd.f32 0.0, %v1173
        %v1175 = vpop.f32.mrb[0].mxu0
        %1176 = vmatprep.mubr.f32.mxu0 0.0
        %1177 = vmatmul.mubr.f32.gmra.mrb[0].mxu0 %v1050
        %v1178 = vpop.f32.mrb[0].mxu0
        %v1179 = vadd.f32 0.0, %v1178
        %v1180 = vpop.f32.mrb[0].mxu0
        %1181 = vmatprep.mubr.f32.mxu0 0.0
        %1182 = vmatmul.mubr.f32.gmra.mrb[0].mxu0 %v1052
        %v1183 = vpop.f32.mrb[0].mxu0
        %v1184 = vadd.f32 0.0, %v1183
        %v1185 = vpop.f32.mrb[0].mxu0
        %1186 = vmatprep.mubr.f32.mxu0 0.0
        %1187 = vmatmul.mubr.f32.gmra.mrb[0].mxu0 %v1054
        %v1188 = vpop.f32.mrb[0].mxu0
        %v1189 = vadd.f32 0.0, %v1188
        %v1190 = vpop.f32.mrb[0].mxu0
        %1191 = vmatprep.mubr.f32.mxu0 0.0
        %1192 = vmatmul.mubr.f32.gmra.mrb[0].mxu0 %v1056
        %v1193 = vpop.f32.mrb[0].mxu0
        %v1194 = vadd.f32 0.0, %v1193
        %v1195 = vpop.f32.mrb[0].mxu0
        %1196 = vmatprep.mubr.f32.mxu0 0.0
        %1197 = vmatmul.mubr.f32.gmra.mrb[0].mxu0 %v1058
        %v1198 = vpop.f32.mrb[0].mxu0
        %v1199 = vadd.f32 0.0, %v1198
        %v1200 = vpop.f32.mrb[0].mxu0
        %1201 = vmatprep.mubr.f32.mxu0 0.0
        %1202 = vmatmul.mubr.f32.gmra.mrb[0].mxu0 %v1060
        %v1203 = vpop.f32.mrb[0].mxu0
        %v1204 = vadd.f32 0.0, %v1203
        %v1205 = vpop.f32.mrb[0].mxu0
        %1206 = vdwg.mxu0
        %s1207 = scalar_lea.vmem %s297, 256 [#allocation8]
        %1208 = vst [vmem:[%s1207] sm:$0xff] %v1129
        %1209 = vst [vmem:[%s1207 + $0x8] sm:$0xff] %v1134
        %1210 = vst [vmem:[%s1207 + $0x10] sm:$0xff] %v1139
        %1211 = vst [vmem:[%s1207 + $0x18] sm:$0xff] %v1144
        %1212 = vst [vmem:[%s1207 + $0x20] sm:$0xff] %v1149
        %1213 = vst [vmem:[%s1207 + $0x28] sm:$0xff] %v1154
        %1214 = vst [vmem:[%s1207 + $0x30] sm:$0xff] %v1159
        %1215 = vst [vmem:[%s1207 + $0x38] sm:$0xff] %v1164
        %1216 = vst [vmem:[%s1207 + $0x40] sm:$0xff] %v1169
        %1217 = vst [vmem:[%s1207 + $0x48] sm:$0xff] %v1174
        %1218 = vst [vmem:[%s1207 + $0x50] sm:$0xff] %v1179
        %1219 = vst [vmem:[%s1207 + $0x58] sm:$0xff] %v1184
        %1220 = vst [vmem:[%s1207 + $0x60] sm:$0xff] %v1189
        %1221 = vst [vmem:[%s1207 + $0x68] sm:$0xff] %v1194
        %1222 = vst [vmem:[%s1207 + $0x70] sm:$0xff] %v1199
        %1223 = vst [vmem:[%s1207 + $0x78] sm:$0xff] %v1204
        %1224 = vrot.lane.b32.xlu0 %v546, 104
        %v1225 = vpop.permute.xlu0 %1224
        %1226 = vrot.lane.b32.xlu0 %v547, 104
        %v1227 = vpop.permute.xlu0 %1226
        %1228 = vrot.lane.b32.xlu0 %v548, 104
        %v1229 = vpop.permute.xlu0 %1228
        %1230 = vrot.lane.b32.xlu0 %v549, 104
        %v1231 = vpop.permute.xlu0 %1230
        %1232 = vrot.lane.b32.xlu0 %v550, 104
        %v1233 = vpop.permute.xlu0 %1232
        %1234 = vrot.lane.b32.xlu0 %v551, 104
        %v1235 = vpop.permute.xlu0 %1234
        %1236 = vrot.lane.b32.xlu0 %v552, 104
        %v1237 = vpop.permute.xlu0 %1236
        %1238 = vrot.lane.b32.xlu0 %v553, 104
        %v1239 = vpop.permute.xlu0 %1238
        %1240 = vrot.lane.b32.xlu0 %v554, 104
        %v1241 = vpop.permute.xlu0 %1240
        %1242 = vrot.lane.b32.xlu0 %v555, 104
        %v1243 = vpop.permute.xlu0 %1242
        %1244 = vrot.lane.b32.xlu0 %v556, 104
        %v1245 = vpop.permute.xlu0 %1244
        %1246 = vrot.lane.b32.xlu0 %v557, 104
        %v1247 = vpop.permute.xlu0 %1246
        %1248 = vrot.lane.b32.xlu0 %v558, 104
        %v1249 = vpop.permute.xlu0 %1248
        %1250 = vrot.lane.b32.xlu0 %v559, 104
        %v1251 = vpop.permute.xlu0 %1250
        %1252 = vrot.lane.b32.xlu0 %v560, 104
        %v1253 = vpop.permute.xlu0 %1252
        %1254 = vrot.lane.b32.xlu0 %v561, 104
        %v1255 = vpop.permute.xlu0 %1254
        %v1256 = vsel %vm562, %v1225, 0
        %v1258 = vsel %vm562, %v1227, 0
        %v1260 = vsel %vm562, %v1229, 0
        %v1262 = vsel %vm562, %v1231, 0
        %v1264 = vsel %vm562, %v1233, 0
        %v1266 = vsel %vm562, %v1235, 0
        %v1268 = vsel %vm562, %v1237, 0
        %v1270 = vsel %vm562, %v1239, 0
        %v1272 = vsel %vm562, %v1241, 0
        %v1274 = vsel %vm562, %v1243, 0
        %v1276 = vsel %vm562, %v1245, 0
        %v1278 = vsel %vm562, %v1247, 0
        %v1280 = vsel %vm562, %v1249, 0
        %v1282 = vsel %vm562, %v1251, 0
        %v1284 = vsel %vm562, %v1253, 0
        %v1286 = vsel %vm562, %v1255, 0
        %1288 = vmatprep.subr.mxu0 0.0
        %1289 = vmatpush1.msra.mxu0 %v545
        %1290 = vmatprep.subr.mxu0 0.0
        %1291 = vmatpush1.msra.mxu0 0.0
        %1292 = vmatprep.subr.mxu0 0.0
        %1293 = vmatpush1.msra.mxu0 0.0
        %1294 = vmatprep.subr.mxu0 0.0
        %1295 = vmatpush1.msra.mxu0 0.0
        %1296 = vmatprep.subr.mxu0 0.0
        %1297 = vmatpush1.msra.mxu0 0.0
        %1298 = vmatprep.subr.mxu0 0.0
        %1299 = vmatpush1.msra.mxu0 0.0
        %1300 = vmatprep.subr.mxu0 0.0
        %1301 = vmatpush1.msra.mxu0 0.0
        %1302 = vmatprep.subr.mxu0 0.0
        %1303 = vmatpush1.msra.mxu0 0.0
        %1304 = vmatprep.subr.mxu0 0.0
        %1305 = vmatpush1.msra.mxu0 0.0
        %1306 = vmatprep.subr.mxu0 0.0
        %1307 = vmatpush1.msra.mxu0 0.0
        %1308 = vmatprep.subr.mxu0 0.0
        %1309 = vmatpush1.msra.mxu0 0.0
        %1310 = vmatprep.subr.mxu0 0.0
        %1311 = vmatpush1.msra.mxu0 0.0
        %1312 = vmatprep.subr.mxu0 0.0
        %1313 = vmatpush1.msra.mxu0 0.0
        %1314 = vmatprep.subr.mxu0 0.0
        %1315 = vmatpush1.msra.mxu0 0.0
        %1316 = vmatprep.subr.mxu0 0.0
        %1317 = vmatpush1.msra.mxu0 0.0
        %1318 = vmatprep.subr.mxu0 0.0
        %1319 = vmatpush1.msra.mxu0 0.0
        %1320 = vmatprep.subr.mxu0 0.0
        %1321 = vmatpush1.msra.mxu0 0.0
        %1322 = vmatprep.subr.mxu0 0.0
        %1323 = vmatpush1.msra.mxu0 0.0
        %1324 = vmatprep.subr.mxu0 0.0
        %1325 = vmatpush1.msra.mxu0 0.0
        %1326 = vmatprep.subr.mxu0 0.0
        %1327 = vmatpush1.msra.mxu0 0.0
        %1328 = vmatprep.subr.mxu0 0.0
        %1329 = vmatpush1.msra.mxu0 0.0
        %1330 = vmatprep.subr.mxu0 0.0
        %1331 = vmatpush1.msra.mxu0 0.0
        %1332 = vmatprep.subr.mxu0 0.0
        %1333 = vmatpush1.msra.mxu0 0.0
        %1334 = vmatprep.subr.mxu0 0.0
        %1335 = vmatpush1.msra.mxu0 0.0
        %1336 = vmatprep.subr.mxu0 0.0
        %1337 = vmatpush1.msra.mxu0 0.0
        %1338 = vmatprep.subr.mxu0 0.0
        %1339 = vmatpush1.msra.mxu0 0.0
        %1340 = vmatprep.subr.mxu0 0.0
        %1341 = vmatpush1.msra.mxu0 0.0
        %1342 = vmatprep.subr.mxu0 0.0
        %1343 = vmatpush1.msra.mxu0 0.0
        %1344 = vmatprep.subr.mxu0 0.0
        %1345 = vmatpush1.msra.mxu0 0.0
        %1346 = vmatprep.subr.mxu0 0.0
        %1347 = vmatpush1.msra.mxu0 0.0
        %1348 = vmatprep.subr.mxu0 0.0
        %1349 = vmatpush1.msra.mxu0 0.0
        %1350 = vmatprep.subr.mxu0 0.0
        %1351 = vmatpush1.msra.mxu0 0.0
        %1352 = vmatprep.mubr.f32.mxu0 0.0
        %1353 = vmatmul.mubr.f32.gmra.mrb[0].mxu0 %v1256
        %v1354 = vpop.f32.mrb[0].mxu0
        %v1355 = vadd.f32 0.0, %v1354
        %v1356 = vpop.f32.mrb[0].mxu0
        %1357 = vmatprep.mubr.f32.mxu0 0.0
        %1358 = vmatmul.mubr.f32.gmra.mrb[0].mxu0 %v1258
        %v1359 = vpop.f32.mrb[0].mxu0
        %v1360 = vadd.f32 0.0, %v1359
        %v1361 = vpop.f32.mrb[0].mxu0
        %1362 = vmatprep.mubr.f32.mxu0 0.0
        %1363 = vmatmul.mubr.f32.gmra.mrb[0].mxu0 %v1260
        %v1364 = vpop.f32.mrb[0].mxu0
        %v1365 = vadd.f32 0.0, %v1364
        %v1366 = vpop.f32.mrb[0].mxu0
        %1367 = vmatprep.mubr.f32.mxu0 0.0
        %1368 = vmatmul.mubr.f32.gmra.mrb[0].mxu0 %v1262
        %v1369 = vpop.f32.mrb[0].mxu0
        %v1370 = vadd.f32 0.0, %v1369
        %v1371 = vpop.f32.mrb[0].mxu0
        %1372 = vmatprep.mubr.f32.mxu0 0.0
        %1373 = vmatmul.mubr.f32.gmra.mrb[0].mxu0 %v1264
        %v1374 = vpop.f32.mrb[0].mxu0
        %v1375 = vadd.f32 0.0, %v1374
        %v1376 = vpop.f32.mrb[0].mxu0
        %1377 = vmatprep.mubr.f32.mxu0 0.0
        %1378 = vmatmul.mubr.f32.gmra.mrb[0].mxu0 %v1266
        %v1379 = vpop.f32.mrb[0].mxu0
        %v1380 = vadd.f32 0.0, %v1379
        %v1381 = vpop.f32.mrb[0].mxu0
        %1382 = vmatprep.mubr.f32.mxu0 0.0
        %1383 = vmatmul.mubr.f32.gmra.mrb[0].mxu0 %v1268
        %v1384 = vpop.f32.mrb[0].mxu0
        %v1385 = vadd.f32 0.0, %v1384
        %v1386 = vpop.f32.mrb[0].mxu0
        %1387 = vmatprep.mubr.f32.mxu0 0.0
        %1388 = vmatmul.mubr.f32.gmra.mrb[0].mxu0 %v1270
        %v1389 = vpop.f32.mrb[0].mxu0
        %v1390 = vadd.f32 0.0, %v1389
        %v1391 = vpop.f32.mrb[0].mxu0
        %1392 = vmatprep.mubr.f32.mxu0 0.0
        %1393 = vmatmul.mubr.f32.gmra.mrb[0].mxu0 %v1272
        %v1394 = vpop.f32.mrb[0].mxu0
        %v1395 = vadd.f32 0.0, %v1394
        %v1396 = vpop.f32.mrb[0].mxu0
        %1397 = vmatprep.mubr.f32.mxu0 0.0
        %1398 = vmatmul.mubr.f32.gmra.mrb[0].mxu0 %v1274
        %v1399 = vpop.f32.mrb[0].mxu0
        %v1400 = vadd.f32 0.0, %v1399
        %v1401 = vpop.f32.mrb[0].mxu0
        %1402 = vmatprep.mubr.f32.mxu0 0.0
        %1403 = vmatmul.mubr.f32.gmra.mrb[0].mxu0 %v1276
        %v1404 = vpop.f32.mrb[0].mxu0
        %v1405 = vadd.f32 0.0, %v1404
        %v1406 = vpop.f32.mrb[0].mxu0
        %1407 = vmatprep.mubr.f32.mxu0 0.0
        %1408 = vmatmul.mubr.f32.gmra.mrb[0].mxu0 %v1278
        %v1409 = vpop.f32.mrb[0].mxu0
        %v1410 = vadd.f32 0.0, %v1409
        %v1411 = vpop.f32.mrb[0].mxu0
        %1412 = vmatprep.mubr.f32.mxu0 0.0
        %1413 = vmatmul.mubr.f32.gmra.mrb[0].mxu0 %v1280
        %v1414 = vpop.f32.mrb[0].mxu0
        %v1415 = vadd.f32 0.0, %v1414
        %v1416 = vpop.f32.mrb[0].mxu0
        %1417 = vmatprep.mubr.f32.mxu0 0.0
        %1418 = vmatmul.mubr.f32.gmra.mrb[0].mxu0 %v1282
        %v1419 = vpop.f32.mrb[0].mxu0
        %v1420 = vadd.f32 0.0, %v1419
        %v1421 = vpop.f32.mrb[0].mxu0
        %1422 = vmatprep.mubr.f32.mxu0 0.0
        %1423 = vmatmul.mubr.f32.gmra.mrb[0].mxu0 %v1284
        %v1424 = vpop.f32.mrb[0].mxu0
        %v1425 = vadd.f32 0.0, %v1424
        %v1426 = vpop.f32.mrb[0].mxu0
        %1427 = vmatprep.mubr.f32.mxu0 0.0
        %1428 = vmatmul.mubr.f32.gmra.mrb[0].mxu0 %v1286
        %v1429 = vpop.f32.mrb[0].mxu0
        %v1430 = vadd.f32 0.0, %v1429
        %v1431 = vpop.f32.mrb[0].mxu0
        %1432 = vdwg.mxu0
        %s1433 = scalar_lea.vmem %s297, 384 [#allocation8]
        %1434 = vst [vmem:[%s1433] sm:$0xff] %v1355
        %1435 = vst [vmem:[%s1433 + $0x8] sm:$0xff] %v1360
        %1436 = vst [vmem:[%s1433 + $0x10] sm:$0xff] %v1365
        %1437 = vst [vmem:[%s1433 + $0x18] sm:$0xff] %v1370
        %1438 = vst [vmem:[%s1433 + $0x20] sm:$0xff] %v1375
        %1439 = vst [vmem:[%s1433 + $0x28] sm:$0xff] %v1380
        %1440 = vst [vmem:[%s1433 + $0x30] sm:$0xff] %v1385
        %1441 = vst [vmem:[%s1433 + $0x38] sm:$0xff] %v1390
        %1442 = vst [vmem:[%s1433 + $0x40] sm:$0xff] %v1395
        %1443 = vst [vmem:[%s1433 + $0x48] sm:$0xff] %v1400
        %1444 = vst [vmem:[%s1433 + $0x50] sm:$0xff] %v1405
        %1445 = vst [vmem:[%s1433 + $0x58] sm:$0xff] %v1410
        %1446 = vst [vmem:[%s1433 + $0x60] sm:$0xff] %v1415
        %1447 = vst [vmem:[%s1433 + $0x68] sm:$0xff] %v1420
        %1448 = vst [vmem:[%s1433 + $0x70] sm:$0xff] %v1425
        %1449 = vst [vmem:[%s1433 + $0x78] sm:$0xff] %v1430
        %1450 = vrot.lane.b32.xlu0 %v546, 96
        %v1451 = vpop.permute.xlu0 %1450
        %1452 = vrot.lane.b32.xlu0 %v547, 96
        %v1453 = vpop.permute.xlu0 %1452
        %1454 = vrot.lane.b32.xlu0 %v548, 96
        %v1455 = vpop.permute.xlu0 %1454
        %1456 = vrot.lane.b32.xlu0 %v549, 96
        %v1457 = vpop.permute.xlu0 %1456
        %1458 = vrot.lane.b32.xlu0 %v550, 96
        %v1459 = vpop.permute.xlu0 %1458
        %1460 = vrot.lane.b32.xlu0 %v551, 96
        %v1461 = vpop.permute.xlu0 %1460
        %1462 = vrot.lane.b32.xlu0 %v552, 96
        %v1463 = vpop.permute.xlu0 %1462
        %1464 = vrot.lane.b32.xlu0 %v553, 96
        %v1465 = vpop.permute.xlu0 %1464
        %1466 = vrot.lane.b32.xlu0 %v554, 96
        %v1467 = vpop.permute.xlu0 %1466
        %1468 = vrot.lane.b32.xlu0 %v555, 96
        %v1469 = vpop.permute.xlu0 %1468
        %1470 = vrot.lane.b32.xlu0 %v556, 96
        %v1471 = vpop.permute.xlu0 %1470
        %1472 = vrot.lane.b32.xlu0 %v557, 96
        %v1473 = vpop.permute.xlu0 %1472
        %1474 = vrot.lane.b32.xlu0 %v558, 96
        %v1475 = vpop.permute.xlu0 %1474
        %1476 = vrot.lane.b32.xlu0 %v559, 96
        %v1477 = vpop.permute.xlu0 %1476
        %1478 = vrot.lane.b32.xlu0 %v560, 96
        %v1479 = vpop.permute.xlu0 %1478
        %1480 = vrot.lane.b32.xlu0 %v561, 96
        %v1481 = vpop.permute.xlu0 %1480
        %v1482 = vsel %vm562, %v1451, 0
        %v1484 = vsel %vm562, %v1453, 0
        %v1486 = vsel %vm562, %v1455, 0
        %v1488 = vsel %vm562, %v1457, 0
        %v1490 = vsel %vm562, %v1459, 0
        %v1492 = vsel %vm562, %v1461, 0
        %v1494 = vsel %vm562, %v1463, 0
        %v1496 = vsel %vm562, %v1465, 0
        %v1498 = vsel %vm562, %v1467, 0
        %v1500 = vsel %vm562, %v1469, 0
        %v1502 = vsel %vm562, %v1471, 0
        %v1504 = vsel %vm562, %v1473, 0
        %v1506 = vsel %vm562, %v1475, 0
        %v1508 = vsel %vm562, %v1477, 0
        %v1510 = vsel %vm562, %v1479, 0
        %v1512 = vsel %vm562, %v1481, 0
        %1514 = vmatprep.subr.mxu0 0.0
        %1515 = vmatpush1.msra.mxu0 %v545
        %1516 = vmatprep.subr.mxu0 0.0
        %1517 = vmatpush1.msra.mxu0 0.0
        %1518 = vmatprep.subr.mxu0 0.0
        %1519 = vmatpush1.msra.mxu0 0.0
        %1520 = vmatprep.subr.mxu0 0.0
        %1521 = vmatpush1.msra.mxu0 0.0
        %1522 = vmatprep.subr.mxu0 0.0
        %1523 = vmatpush1.msra.mxu0 0.0
        %1524 = vmatprep.subr.mxu0 0.0
        %1525 = vmatpush1.msra.mxu0 0.0
        %1526 = vmatprep.subr.mxu0 0.0
        %1527 = vmatpush1.msra.mxu0 0.0
        %1528 = vmatprep.subr.mxu0 0.0
        %1529 = vmatpush1.msra.mxu0 0.0
        %1530 = vmatprep.subr.mxu0 0.0
        %1531 = vmatpush1.msra.mxu0 0.0
        %1532 = vmatprep.subr.mxu0 0.0
        %1533 = vmatpush1.msra.mxu0 0.0
        %1534 = vmatprep.subr.mxu0 0.0
        %1535 = vmatpush1.msra.mxu0 0.0
        %1536 = vmatprep.subr.mxu0 0.0
        %1537 = vmatpush1.msra.mxu0 0.0
        %1538 = vmatprep.subr.mxu0 0.0
        %1539 = vmatpush1.msra.mxu0 0.0
        %1540 = vmatprep.subr.mxu0 0.0
        %1541 = vmatpush1.msra.mxu0 0.0
        %1542 = vmatprep.subr.mxu0 0.0
        %1543 = vmatpush1.msra.mxu0 0.0
        %1544 = vmatprep.subr.mxu0 0.0
        %1545 = vmatpush1.msra.mxu0 0.0
        %1546 = vmatprep.subr.mxu0 0.0
        %1547 = vmatpush1.msra.mxu0 0.0
        %1548 = vmatprep.subr.mxu0 0.0
        %1549 = vmatpush1.msra.mxu0 0.0
        %1550 = vmatprep.subr.mxu0 0.0
        %1551 = vmatpush1.msra.mxu0 0.0
        %1552 = vmatprep.subr.mxu0 0.0
        %1553 = vmatpush1.msra.mxu0 0.0
        %1554 = vmatprep.subr.mxu0 0.0
        %1555 = vmatpush1.msra.mxu0 0.0
        %1556 = vmatprep.subr.mxu0 0.0
        %1557 = vmatpush1.msra.mxu0 0.0
        %1558 = vmatprep.subr.mxu0 0.0
        %1559 = vmatpush1.msra.mxu0 0.0
        %1560 = vmatprep.subr.mxu0 0.0
        %1561 = vmatpush1.msra.mxu0 0.0
        %1562 = vmatprep.subr.mxu0 0.0
        %1563 = vmatpush1.msra.mxu0 0.0
        %1564 = vmatprep.subr.mxu0 0.0
        %1565 = vmatpush1.msra.mxu0 0.0
        %1566 = vmatprep.subr.mxu0 0.0
        %1567 = vmatpush1.msra.mxu0 0.0
        %1568 = vmatprep.subr.mxu0 0.0
        %1569 = vmatpush1.msra.mxu0 0.0
        %1570 = vmatprep.subr.mxu0 0.0
        %1571 = vmatpush1.msra.mxu0 0.0
        %1572 = vmatprep.subr.mxu0 0.0
        %1573 = vmatpush1.msra.mxu0 0.0
        %1574 = vmatprep.subr.mxu0 0.0
        %1575 = vmatpush1.msra.mxu0 0.0
        %1576 = vmatprep.subr.mxu0 0.0
        %1577 = vmatpush1.msra.mxu0 0.0
        %1578 = vmatprep.mubr.f32.mxu0 0.0
        %1579 = vmatmul.mubr.f32.gmra.mrb[0].mxu0 %v1482
        %v1580 = vpop.f32.mrb[0].mxu0
        %v1581 = vadd.f32 0.0, %v1580
        %v1582 = vpop.f32.mrb[0].mxu0
        %1583 = vmatprep.mubr.f32.mxu0 0.0
        %1584 = vmatmul.mubr.f32.gmra.mrb[0].mxu0 %v1484
        %v1585 = vpop.f32.mrb[0].mxu0
        %v1586 = vadd.f32 0.0, %v1585
        %v1587 = vpop.f32.mrb[0].mxu0
        %1588 = vmatprep.mubr.f32.mxu0 0.0
        %1589 = vmatmul.mubr.f32.gmra.mrb[0].mxu0 %v1486
        %v1590 = vpop.f32.mrb[0].mxu0
        %v1591 = vadd.f32 0.0, %v1590
        %v1592 = vpop.f32.mrb[0].mxu0
        %1593 = vmatprep.mubr.f32.mxu0 0.0
        %1594 = vmatmul.mubr.f32.gmra.mrb[0].mxu0 %v1488
        %v1595 = vpop.f32.mrb[0].mxu0
        %v1596 = vadd.f32 0.0, %v1595
        %v1597 = vpop.f32.mrb[0].mxu0
        %1598 = vmatprep.mubr.f32.mxu0 0.0
        %1599 = vmatmul.mubr.f32.gmra.mrb[0].mxu0 %v1490
        %v1600 = vpop.f32.mrb[0].mxu0
        %v1601 = vadd.f32 0.0, %v1600
        %v1602 = vpop.f32.mrb[0].mxu0
        %1603 = vmatprep.mubr.f32.mxu0 0.0
        %1604 = vmatmul.mubr.f32.gmra.mrb[0].mxu0 %v1492
        %v1605 = vpop.f32.mrb[0].mxu0
        %v1606 = vadd.f32 0.0, %v1605
        %v1607 = vpop.f32.mrb[0].mxu0
        %1608 = vmatprep.mubr.f32.mxu0 0.0
        %1609 = vmatmul.mubr.f32.gmra.mrb[0].mxu0 %v1494
        %v1610 = vpop.f32.mrb[0].mxu0
        %v1611 = vadd.f32 0.0, %v1610
        %v1612 = vpop.f32.mrb[0].mxu0
        %1613 = vmatprep.mubr.f32.mxu0 0.0
        %1614 = vmatmul.mubr.f32.gmra.mrb[0].mxu0 %v1496
        %v1615 = vpop.f32.mrb[0].mxu0
        %v1616 = vadd.f32 0.0, %v1615
        %v1617 = vpop.f32.mrb[0].mxu0
        %1618 = vmatprep.mubr.f32.mxu0 0.0
        %1619 = vmatmul.mubr.f32.gmra.mrb[0].mxu0 %v1498
        %v1620 = vpop.f32.mrb[0].mxu0
        %v1621 = vadd.f32 0.0, %v1620
        %v1622 = vpop.f32.mrb[0].mxu0
        %1623 = vmatprep.mubr.f32.mxu0 0.0
        %1624 = vmatmul.mubr.f32.gmra.mrb[0].mxu0 %v1500
        %v1625 = vpop.f32.mrb[0].mxu0
        %v1626 = vadd.f32 0.0, %v1625
        %v1627 = vpop.f32.mrb[0].mxu0
        %1628 = vmatprep.mubr.f32.mxu0 0.0
        %1629 = vmatmul.mubr.f32.gmra.mrb[0].mxu0 %v1502
        %v1630 = vpop.f32.mrb[0].mxu0
        %v1631 = vadd.f32 0.0, %v1630
        %v1632 = vpop.f32.mrb[0].mxu0
        %1633 = vmatprep.mubr.f32.mxu0 0.0
        %1634 = vmatmul.mubr.f32.gmra.mrb[0].mxu0 %v1504
        %v1635 = vpop.f32.mrb[0].mxu0
        %v1636 = vadd.f32 0.0, %v1635
        %v1637 = vpop.f32.mrb[0].mxu0
        %1638 = vmatprep.mubr.f32.mxu0 0.0
        %1639 = vmatmul.mubr.f32.gmra.mrb[0].mxu0 %v1506
        %v1640 = vpop.f32.mrb[0].mxu0
        %v1641 = vadd.f32 0.0, %v1640
        %v1642 = vpop.f32.mrb[0].mxu0
        %1643 = vmatprep.mubr.f32.mxu0 0.0
        %1644 = vmatmul.mubr.f32.gmra.mrb[0].mxu0 %v1508
        %v1645 = vpop.f32.mrb[0].mxu0
        %v1646 = vadd.f32 0.0, %v1645
        %v1647 = vpop.f32.mrb[0].mxu0
        %1648 = vmatprep.mubr.f32.mxu0 0.0
        %1649 = vmatmul.mubr.f32.gmra.mrb[0].mxu0 %v1510
        %v1650 = vpop.f32.mrb[0].mxu0
        %v1651 = vadd.f32 0.0, %v1650
        %v1652 = vpop.f32.mrb[0].mxu0
        %1653 = vmatprep.mubr.f32.mxu0 0.0
        %1654 = vmatmul.mubr.f32.gmra.mrb[0].mxu0 %v1512
        %v1655 = vpop.f32.mrb[0].mxu0
        %v1656 = vadd.f32 0.0, %v1655
        %v1657 = vpop.f32.mrb[0].mxu0
        %1658 = vdwg.mxu0
        %s1659 = scalar_lea.vmem %s297, 512 [#allocation8]
        %1660 = vst [vmem:[%s1659] sm:$0xff] %v1581
        %1661 = vst [vmem:[%s1659 + $0x8] sm:$0xff] %v1586
        %1662 = vst [vmem:[%s1659 + $0x10] sm:$0xff] %v1591
        %1663 = vst [vmem:[%s1659 + $0x18] sm:$0xff] %v1596
        %1664 = vst [vmem:[%s1659 + $0x20] sm:$0xff] %v1601
        %1665 = vst [vmem:[%s1659 + $0x28] sm:$0xff] %v1606
        %1666 = vst [vmem:[%s1659 + $0x30] sm:$0xff] %v1611
        %1667 = vst [vmem:[%s1659 + $0x38] sm:$0xff] %v1616
        %1668 = vst [vmem:[%s1659 + $0x40] sm:$0xff] %v1621
        %1669 = vst [vmem:[%s1659 + $0x48] sm:$0xff] %v1626
        %1670 = vst [vmem:[%s1659 + $0x50] sm:$0xff] %v1631
        %1671 = vst [vmem:[%s1659 + $0x58] sm:$0xff] %v1636
        %1672 = vst [vmem:[%s1659 + $0x60] sm:$0xff] %v1641
        %1673 = vst [vmem:[%s1659 + $0x68] sm:$0xff] %v1646
        %1674 = vst [vmem:[%s1659 + $0x70] sm:$0xff] %v1651
        %1675 = vst [vmem:[%s1659 + $0x78] sm:$0xff] %v1656
        %1676 = vrot.lane.b32.xlu0 %v546, 88
        %v1677 = vpop.permute.xlu0 %1676
        %1678 = vrot.lane.b32.xlu0 %v547, 88
        %v1679 = vpop.permute.xlu0 %1678
        %1680 = vrot.lane.b32.xlu0 %v548, 88
        %v1681 = vpop.permute.xlu0 %1680
        %1682 = vrot.lane.b32.xlu0 %v549, 88
        %v1683 = vpop.permute.xlu0 %1682
        %1684 = vrot.lane.b32.xlu0 %v550, 88
        %v1685 = vpop.permute.xlu0 %1684
        %1686 = vrot.lane.b32.xlu0 %v551, 88
        %v1687 = vpop.permute.xlu0 %1686
        %1688 = vrot.lane.b32.xlu0 %v552, 88
        %v1689 = vpop.permute.xlu0 %1688
        %1690 = vrot.lane.b32.xlu0 %v553, 88
        %v1691 = vpop.permute.xlu0 %1690
        %1692 = vrot.lane.b32.xlu0 %v554, 88
        %v1693 = vpop.permute.xlu0 %1692
        %1694 = vrot.lane.b32.xlu0 %v555, 88
        %v1695 = vpop.permute.xlu0 %1694
        %1696 = vrot.lane.b32.xlu0 %v556, 88
        %v1697 = vpop.permute.xlu0 %1696
        %1698 = vrot.lane.b32.xlu0 %v557, 88
        %v1699 = vpop.permute.xlu0 %1698
        %1700 = vrot.lane.b32.xlu0 %v558, 88
        %v1701 = vpop.permute.xlu0 %1700
        %1702 = vrot.lane.b32.xlu0 %v559, 88
        %v1703 = vpop.permute.xlu0 %1702
        %1704 = vrot.lane.b32.xlu0 %v560, 88
        %v1705 = vpop.permute.xlu0 %1704
        %1706 = vrot.lane.b32.xlu0 %v561, 88
        %v1707 = vpop.permute.xlu0 %1706
        %v1708 = vsel %vm562, %v1677, 0
        %v1710 = vsel %vm562, %v1679, 0
        %v1712 = vsel %vm562, %v1681, 0
        %v1714 = vsel %vm562, %v1683, 0
        %v1716 = vsel %vm562, %v1685, 0
        %v1718 = vsel %vm562, %v1687, 0
        %v1720 = vsel %vm562, %v1689, 0
        %v1722 = vsel %vm562, %v1691, 0
        %v1724 = vsel %vm562, %v1693, 0
        %v1726 = vsel %vm562, %v1695, 0
        %v1728 = vsel %vm562, %v1697, 0
        %v1730 = vsel %vm562, %v1699, 0
        %v1732 = vsel %vm562, %v1701, 0
        %v1734 = vsel %vm562, %v1703, 0
        %v1736 = vsel %vm562, %v1705, 0
        %v1738 = vsel %vm562, %v1707, 0
        %1740 = vmatprep.subr.mxu0 0.0
        %1741 = vmatpush1.msra.mxu0 %v545
        %1742 = vmatprep.subr.mxu0 0.0
        %1743 = vmatpush1.msra.mxu0 0.0
        %1744 = vmatprep.subr.mxu0 0.0
        %1745 = vmatpush1.msra.mxu0 0.0
        %1746 = vmatprep.subr.mxu0 0.0
        %1747 = vmatpush1.msra.mxu0 0.0
        %1748 = vmatprep.subr.mxu0 0.0
        %1749 = vmatpush1.msra.mxu0 0.0
        %1750 = vmatprep.subr.mxu0 0.0
        %1751 = vmatpush1.msra.mxu0 0.0
        %1752 = vmatprep.subr.mxu0 0.0
        %1753 = vmatpush1.msra.mxu0 0.0
        %1754 = vmatprep.subr.mxu0 0.0
        %1755 = vmatpush1.msra.mxu0 0.0
        %1756 = vmatprep.subr.mxu0 0.0
        %1757 = vmatpush1.msra.mxu0 0.0
        %1758 = vmatprep.subr.mxu0 0.0
        %1759 = vmatpush1.msra.mxu0 0.0
        %1760 = vmatprep.subr.mxu0 0.0
        %1761 = vmatpush1.msra.mxu0 0.0
        %1762 = vmatprep.subr.mxu0 0.0
        %1763 = vmatpush1.msra.mxu0 0.0
        %1764 = vmatprep.subr.mxu0 0.0
        %1765 = vmatpush1.msra.mxu0 0.0
        %1766 = vmatprep.subr.mxu0 0.0
        %1767 = vmatpush1.msra.mxu0 0.0
        %1768 = vmatprep.subr.mxu0 0.0
        %1769 = vmatpush1.msra.mxu0 0.0
        %1770 = vmatprep.subr.mxu0 0.0
        %1771 = vmatpush1.msra.mxu0 0.0
        %1772 = vmatprep.subr.mxu0 0.0
        %1773 = vmatpush1.msra.mxu0 0.0
        %1774 = vmatprep.subr.mxu0 0.0
        %1775 = vmatpush1.msra.mxu0 0.0
        %1776 = vmatprep.subr.mxu0 0.0
        %1777 = vmatpush1.msra.mxu0 0.0
        %1778 = vmatprep.subr.mxu0 0.0
        %1779 = vmatpush1.msra.mxu0 0.0
        %1780 = vmatprep.subr.mxu0 0.0
        %1781 = vmatpush1.msra.mxu0 0.0
        %1782 = vmatprep.subr.mxu0 0.0
        %1783 = vmatpush1.msra.mxu0 0.0
        %1784 = vmatprep.subr.mxu0 0.0
        %1785 = vmatpush1.msra.mxu0 0.0
        %1786 = vmatprep.subr.mxu0 0.0
        %1787 = vmatpush1.msra.mxu0 0.0
        %1788 = vmatprep.subr.mxu0 0.0
        %1789 = vmatpush1.msra.mxu0 0.0
        %1790 = vmatprep.subr.mxu0 0.0
        %1791 = vmatpush1.msra.mxu0 0.0
        %1792 = vmatprep.subr.mxu0 0.0
        %1793 = vmatpush1.msra.mxu0 0.0
        %1794 = vmatprep.subr.mxu0 0.0
        %1795 = vmatpush1.msra.mxu0 0.0
        %1796 = vmatprep.subr.mxu0 0.0
        %1797 = vmatpush1.msra.mxu0 0.0
        %1798 = vmatprep.subr.mxu0 0.0
        %1799 = vmatpush1.msra.mxu0 0.0
        %1800 = vmatprep.subr.mxu0 0.0
        %1801 = vmatpush1.msra.mxu0 0.0
        %1802 = vmatprep.subr.mxu0 0.0
        %1803 = vmatpush1.msra.mxu0 0.0
        %1804 = vmatprep.mubr.f32.mxu0 0.0
        %1805 = vmatmul.mubr.f32.gmra.mrb[0].mxu0 %v1708
        %v1806 = vpop.f32.mrb[0].mxu0
        %v1807 = vadd.f32 0.0, %v1806
        %v1808 = vpop.f32.mrb[0].mxu0
        %1809 = vmatprep.mubr.f32.mxu0 0.0
        %1810 = vmatmul.mubr.f32.gmra.mrb[0].mxu0 %v1710
        %v1811 = vpop.f32.mrb[0].mxu0
        %v1812 = vadd.f32 0.0, %v1811
        %v1813 = vpop.f32.mrb[0].mxu0
        %1814 = vmatprep.mubr.f32.mxu0 0.0
        %1815 = vmatmul.mubr.f32.gmra.mrb[0].mxu0 %v1712
        %v1816 = vpop.f32.mrb[0].mxu0
        %v1817 = vadd.f32 0.0, %v1816
        %v1818 = vpop.f32.mrb[0].mxu0
        %1819 = vmatprep.mubr.f32.mxu0 0.0
        %1820 = vmatmul.mubr.f32.gmra.mrb[0].mxu0 %v1714
        %v1821 = vpop.f32.mrb[0].mxu0
        %v1822 = vadd.f32 0.0, %v1821
        %v1823 = vpop.f32.mrb[0].mxu0
        %1824 = vmatprep.mubr.f32.mxu0 0.0
        %1825 = vmatmul.mubr.f32.gmra.mrb[0].mxu0 %v1716
        %v1826 = vpop.f32.mrb[0].mxu0
        %v1827 = vadd.f32 0.0, %v1826
        %v1828 = vpop.f32.mrb[0].mxu0
        %1829 = vmatprep.mubr.f32.mxu0 0.0
        %1830 = vmatmul.mubr.f32.gmra.mrb[0].mxu0 %v1718
        %v1831 = vpop.f32.mrb[0].mxu0
        %v1832 = vadd.f32 0.0, %v1831
        %v1833 = vpop.f32.mrb[0].mxu0
        %1834 = vmatprep.mubr.f32.mxu0 0.0
        %1835 = vmatmul.mubr.f32.gmra.mrb[0].mxu0 %v1720
        %v1836 = vpop.f32.mrb[0].mxu0
        %v1837 = vadd.f32 0.0, %v1836
        %v1838 = vpop.f32.mrb[0].mxu0
        %1839 = vmatprep.mubr.f32.mxu0 0.0
        %1840 = vmatmul.mubr.f32.gmra.mrb[0].mxu0 %v1722
        %v1841 = vpop.f32.mrb[0].mxu0
        %v1842 = vadd.f32 0.0, %v1841
        %v1843 = vpop.f32.mrb[0].mxu0
        %1844 = vmatprep.mubr.f32.mxu0 0.0
        %1845 = vmatmul.mubr.f32.gmra.mrb[0].mxu0 %v1724
        %v1846 = vpop.f32.mrb[0].mxu0
        %v1847 = vadd.f32 0.0, %v1846
        %v1848 = vpop.f32.mrb[0].mxu0
        %1849 = vmatprep.mubr.f32.mxu0 0.0
        %1850 = vmatmul.mubr.f32.gmra.mrb[0].mxu0 %v1726
        %v1851 = vpop.f32.mrb[0].mxu0
        %v1852 = vadd.f32 0.0, %v1851
        %v1853 = vpop.f32.mrb[0].mxu0
        %1854 = vmatprep.mubr.f32.mxu0 0.0
        %1855 = vmatmul.mubr.f32.gmra.mrb[0].mxu0 %v1728
        %v1856 = vpop.f32.mrb[0].mxu0
        %v1857 = vadd.f32 0.0, %v1856
        %v1858 = vpop.f32.mrb[0].mxu0
        %1859 = vmatprep.mubr.f32.mxu0 0.0
        %1860 = vmatmul.mubr.f32.gmra.mrb[0].mxu0 %v1730
        %v1861 = vpop.f32.mrb[0].mxu0
        %v1862 = vadd.f32 0.0, %v1861
        %v1863 = vpop.f32.mrb[0].mxu0
        %1864 = vmatprep.mubr.f32.mxu0 0.0
        %1865 = vmatmul.mubr.f32.gmra.mrb[0].mxu0 %v1732
        %v1866 = vpop.f32.mrb[0].mxu0
        %v1867 = vadd.f32 0.0, %v1866
        %v1868 = vpop.f32.mrb[0].mxu0
        %1869 = vmatprep.mubr.f32.mxu0 0.0
        %1870 = vmatmul.mubr.f32.gmra.mrb[0].mxu0 %v1734
        %v1871 = vpop.f32.mrb[0].mxu0
        %v1872 = vadd.f32 0.0, %v1871
        %v1873 = vpop.f32.mrb[0].mxu0
        %1874 = vmatprep.mubr.f32.mxu0 0.0
        %1875 = vmatmul.mubr.f32.gmra.mrb[0].mxu0 %v1736
        %v1876 = vpop.f32.mrb[0].mxu0
        %v1877 = vadd.f32 0.0, %v1876
        %v1878 = vpop.f32.mrb[0].mxu0
        %1879 = vmatprep.mubr.f32.mxu0 0.0
        %1880 = vmatmul.mubr.f32.gmra.mrb[0].mxu0 %v1738
        %v1881 = vpop.f32.mrb[0].mxu0
        %v1882 = vadd.f32 0.0, %v1881
        %v1883 = vpop.f32.mrb[0].mxu0
        %1884 = vdwg.mxu0
        %s1885 = scalar_lea.vmem %s297, 640 [#allocation8]
        %1886 = vst [vmem:[%s1885] sm:$0xff] %v1807
        %1887 = vst [vmem:[%s1885 + $0x8] sm:$0xff] %v1812
        %1888 = vst [vmem:[%s1885 + $0x10] sm:$0xff] %v1817
        %1889 = vst [vmem:[%s1885 + $0x18] sm:$0xff] %v1822
        %1890 = vst [vmem:[%s1885 + $0x20] sm:$0xff] %v1827
        %1891 = vst [vmem:[%s1885 + $0x28] sm:$0xff] %v1832
        %1892 = vst [vmem:[%s1885 + $0x30] sm:$0xff] %v1837
        %1893 = vst [vmem:[%s1885 + $0x38] sm:$0xff] %v1842
        %1894 = vst [vmem:[%s1885 + $0x40] sm:$0xff] %v1847
        %1895 = vst [vmem:[%s1885 + $0x48] sm:$0xff] %v1852
        %1896 = vst [vmem:[%s1885 + $0x50] sm:$0xff] %v1857
        %1897 = vst [vmem:[%s1885 + $0x58] sm:$0xff] %v1862
        %1898 = vst [vmem:[%s1885 + $0x60] sm:$0xff] %v1867
        %1899 = vst [vmem:[%s1885 + $0x68] sm:$0xff] %v1872
        %1900 = vst [vmem:[%s1885 + $0x70] sm:$0xff] %v1877
        %1901 = vst [vmem:[%s1885 + $0x78] sm:$0xff] %v1882
        %1902 = vrot.lane.b32.xlu0 %v546, 80
        %v1903 = vpop.permute.xlu0 %1902
        %1904 = vrot.lane.b32.xlu0 %v547, 80
        %v1905 = vpop.permute.xlu0 %1904
        %1906 = vrot.lane.b32.xlu0 %v548, 80
        %v1907 = vpop.permute.xlu0 %1906
        %1908 = vrot.lane.b32.xlu0 %v549, 80
        %v1909 = vpop.permute.xlu0 %1908
        %1910 = vrot.lane.b32.xlu0 %v550, 80
        %v1911 = vpop.permute.xlu0 %1910
        %1912 = vrot.lane.b32.xlu0 %v551, 80
        %v1913 = vpop.permute.xlu0 %1912
        %1914 = vrot.lane.b32.xlu0 %v552, 80
        %v1915 = vpop.permute.xlu0 %1914
        %1916 = vrot.lane.b32.xlu0 %v553, 80
        %v1917 = vpop.permute.xlu0 %1916
        %1918 = vrot.lane.b32.xlu0 %v554, 80
        %v1919 = vpop.permute.xlu0 %1918
        %1920 = vrot.lane.b32.xlu0 %v555, 80
        %v1921 = vpop.permute.xlu0 %1920
        %1922 = vrot.lane.b32.xlu0 %v556, 80
        %v1923 = vpop.permute.xlu0 %1922
        %1924 = vrot.lane.b32.xlu0 %v557, 80
        %v1925 = vpop.permute.xlu0 %1924
        %1926 = vrot.lane.b32.xlu0 %v558, 80
        %v1927 = vpop.permute.xlu0 %1926
        %1928 = vrot.lane.b32.xlu0 %v559, 80
        %v1929 = vpop.permute.xlu0 %1928
        %1930 = vrot.lane.b32.xlu0 %v560, 80
        %v1931 = vpop.permute.xlu0 %1930
        %1932 = vrot.lane.b32.xlu0 %v561, 80
        %v1933 = vpop.permute.xlu0 %1932
        %v1934 = vsel %vm562, %v1903, 0
        %v1936 = vsel %vm562, %v1905, 0
        %v1938 = vsel %vm562, %v1907, 0
        %v1940 = vsel %vm562, %v1909, 0
        %v1942 = vsel %vm562, %v1911, 0
        %v1944 = vsel %vm562, %v1913, 0
        %v1946 = vsel %vm562, %v1915, 0
        %v1948 = vsel %vm562, %v1917, 0
        %v1950 = vsel %vm562, %v1919, 0
        %v1952 = vsel %vm562, %v1921, 0
        %v1954 = vsel %vm562, %v1923, 0
        %v1956 = vsel %vm562, %v1925, 0
        %v1958 = vsel %vm562, %v1927, 0
        %v1960 = vsel %vm562, %v1929, 0
        %v1962 = vsel %vm562, %v1931, 0
        %v1964 = vsel %vm562, %v1933, 0
        %1966 = vmatprep.subr.mxu0 0.0
        %1967 = vmatpush1.msra.mxu0 %v545
        %1968 = vmatprep.subr.mxu0 0.0
        %1969 = vmatpush1.msra.mxu0 0.0
        %1970 = vmatprep.subr.mxu0 0.0
        %1971 = vmatpush1.msra.mxu0 0.0
        %1972 = vmatprep.subr.mxu0 0.0
        %1973 = vmatpush1.msra.mxu0 0.0
        %1974 = vmatprep.subr.mxu0 0.0
        %1975 = vmatpush1.msra.mxu0 0.0
        %1976 = vmatprep.subr.mxu0 0.0
        %1977 = vmatpush1.msra.mxu0 0.0
        %1978 = vmatprep.subr.mxu0 0.0
        %1979 = vmatpush1.msra.mxu0 0.0
        %1980 = vmatprep.subr.mxu0 0.0
        %1981 = vmatpush1.msra.mxu0 0.0
        %1982 = vmatprep.subr.mxu0 0.0
        %1983 = vmatpush1.msra.mxu0 0.0
        %1984 = vmatprep.subr.mxu0 0.0
        %1985 = vmatpush1.msra.mxu0 0.0
        %1986 = vmatprep.subr.mxu0 0.0
        %1987 = vmatpush1.msra.mxu0 0.0
        %1988 = vmatprep.subr.mxu0 0.0
        %1989 = vmatpush1.msra.mxu0 0.0
        %1990 = vmatprep.subr.mxu0 0.0
        %1991 = vmatpush1.msra.mxu0 0.0
        %1992 = vmatprep.subr.mxu0 0.0
        %1993 = vmatpush1.msra.mxu0 0.0
        %1994 = vmatprep.subr.mxu0 0.0
        %1995 = vmatpush1.msra.mxu0 0.0
        %1996 = vmatprep.subr.mxu0 0.0
        %1997 = vmatpush1.msra.mxu0 0.0
        %1998 = vmatprep.subr.mxu0 0.0
        %1999 = vmatpush1.msra.mxu0 0.0
        %2000 = vmatprep.subr.mxu0 0.0
        %2001 = vmatpush1.msra.mxu0 0.0
        %2002 = vmatprep.subr.mxu0 0.0
        %2003 = vmatpush1.msra.mxu0 0.0
        %2004 = vmatprep.subr.mxu0 0.0
        %2005 = vmatpush1.msra.mxu0 0.0
        %2006 = vmatprep.subr.mxu0 0.0
        %2007 = vmatpush1.msra.mxu0 0.0
        %2008 = vmatprep.subr.mxu0 0.0
        %2009 = vmatpush1.msra.mxu0 0.0
        %2010 = vmatprep.subr.mxu0 0.0
        %2011 = vmatpush1.msra.mxu0 0.0
        %2012 = vmatprep.subr.mxu0 0.0
        %2013 = vmatpush1.msra.mxu0 0.0
        %2014 = vmatprep.subr.mxu0 0.0
        %2015 = vmatpush1.msra.mxu0 0.0
        %2016 = vmatprep.subr.mxu0 0.0
        %2017 = vmatpush1.msra.mxu0 0.0
        %2018 = vmatprep.subr.mxu0 0.0
        %2019 = vmatpush1.msra.mxu0 0.0
        %2020 = vmatprep.subr.mxu0 0.0
        %2021 = vmatpush1.msra.mxu0 0.0
        %2022 = vmatprep.subr.mxu0 0.0
        %2023 = vmatpush1.msra.mxu0 0.0
        %2024 = vmatprep.subr.mxu0 0.0
        %2025 = vmatpush1.msra.mxu0 0.0
        %2026 = vmatprep.subr.mxu0 0.0
        %2027 = vmatpush1.msra.mxu0 0.0
        %2028 = vmatprep.subr.mxu0 0.0
        %2029 = vmatpush1.msra.mxu0 0.0
        %2030 = vmatprep.mubr.f32.mxu0 0.0
        %2031 = vmatmul.mubr.f32.gmra.mrb[0].mxu0 %v1934
        %v2032 = vpop.f32.mrb[0].mxu0
        %v2033 = vadd.f32 0.0, %v2032
        %v2034 = vpop.f32.mrb[0].mxu0
        %2035 = vmatprep.mubr.f32.mxu0 0.0
        %2036 = vmatmul.mubr.f32.gmra.mrb[0].mxu0 %v1936
        %v2037 = vpop.f32.mrb[0].mxu0
        %v2038 = vadd.f32 0.0, %v2037
        %v2039 = vpop.f32.mrb[0].mxu0
        %2040 = vmatprep.mubr.f32.mxu0 0.0
        %2041 = vmatmul.mubr.f32.gmra.mrb[0].mxu0 %v1938
        %v2042 = vpop.f32.mrb[0].mxu0
        %v2043 = vadd.f32 0.0, %v2042
        %v2044 = vpop.f32.mrb[0].mxu0
        %2045 = vmatprep.mubr.f32.mxu0 0.0
        %2046 = vmatmul.mubr.f32.gmra.mrb[0].mxu0 %v1940
        %v2047 = vpop.f32.mrb[0].mxu0
        %v2048 = vadd.f32 0.0, %v2047
        %v2049 = vpop.f32.mrb[0].mxu0
        %2050 = vmatprep.mubr.f32.mxu0 0.0
        %2051 = vmatmul.mubr.f32.gmra.mrb[0].mxu0 %v1942
        %v2052 = vpop.f32.mrb[0].mxu0
        %v2053 = vadd.f32 0.0, %v2052
        %v2054 = vpop.f32.mrb[0].mxu0
        %2055 = vmatprep.mubr.f32.mxu0 0.0
        %2056 = vmatmul.mubr.f32.gmra.mrb[0].mxu0 %v1944
        %v2057 = vpop.f32.mrb[0].mxu0
        %v2058 = vadd.f32 0.0, %v2057
        %v2059 = vpop.f32.mrb[0].mxu0
        %2060 = vmatprep.mubr.f32.mxu0 0.0
        %2061 = vmatmul.mubr.f32.gmra.mrb[0].mxu0 %v1946
        %v2062 = vpop.f32.mrb[0].mxu0
        %v2063 = vadd.f32 0.0, %v2062
        %v2064 = vpop.f32.mrb[0].mxu0
        %2065 = vmatprep.mubr.f32.mxu0 0.0
        %2066 = vmatmul.mubr.f32.gmra.mrb[0].mxu0 %v1948
        %v2067 = vpop.f32.mrb[0].mxu0
        %v2068 = vadd.f32 0.0, %v2067
        %v2069 = vpop.f32.mrb[0].mxu0
        %2070 = vmatprep.mubr.f32.mxu0 0.0
        %2071 = vmatmul.mubr.f32.gmra.mrb[0].mxu0 %v1950
        %v2072 = vpop.f32.mrb[0].mxu0
        %v2073 = vadd.f32 0.0, %v2072
        %v2074 = vpop.f32.mrb[0].mxu0
        %2075 = vmatprep.mubr.f32.mxu0 0.0
        %2076 = vmatmul.mubr.f32.gmra.mrb[0].mxu0 %v1952
        %v2077 = vpop.f32.mrb[0].mxu0
        %v2078 = vadd.f32 0.0, %v2077
        %v2079 = vpop.f32.mrb[0].mxu0
        %2080 = vmatprep.mubr.f32.mxu0 0.0
        %2081 = vmatmul.mubr.f32.gmra.mrb[0].mxu0 %v1954
        %v2082 = vpop.f32.mrb[0].mxu0
        %v2083 = vadd.f32 0.0, %v2082
        %v2084 = vpop.f32.mrb[0].mxu0
        %2085 = vmatprep.mubr.f32.mxu0 0.0
        %2086 = vmatmul.mubr.f32.gmra.mrb[0].mxu0 %v1956
        %v2087 = vpop.f32.mrb[0].mxu0
        %v2088 = vadd.f32 0.0, %v2087
        %v2089 = vpop.f32.mrb[0].mxu0
        %2090 = vmatprep.mubr.f32.mxu0 0.0
        %2091 = vmatmul.mubr.f32.gmra.mrb[0].mxu0 %v1958
        %v2092 = vpop.f32.mrb[0].mxu0
        %v2093 = vadd.f32 0.0, %v2092
        %v2094 = vpop.f32.mrb[0].mxu0
        %2095 = vmatprep.mubr.f32.mxu0 0.0
        %2096 = vmatmul.mubr.f32.gmra.mrb[0].mxu0 %v1960
        %v2097 = vpop.f32.mrb[0].mxu0
        %v2098 = vadd.f32 0.0, %v2097
        %v2099 = vpop.f32.mrb[0].mxu0
        %2100 = vmatprep.mubr.f32.mxu0 0.0
        %2101 = vmatmul.mubr.f32.gmra.mrb[0].mxu0 %v1962
        %v2102 = vpop.f32.mrb[0].mxu0
        %v2103 = vadd.f32 0.0, %v2102
        %v2104 = vpop.f32.mrb[0].mxu0
        %2105 = vmatprep.mubr.f32.mxu0 0.0
        %2106 = vmatmul.mubr.f32.gmra.mrb[0].mxu0 %v1964
        %v2107 = vpop.f32.mrb[0].mxu0
        %v2108 = vadd.f32 0.0, %v2107
        %v2109 = vpop.f32.mrb[0].mxu0
        %2110 = vdwg.mxu0
        %s2111 = scalar_lea.vmem %s297, 768 [#allocation8]
        %2112 = vst [vmem:[%s2111] sm:$0xff] %v2033
        %2113 = vst [vmem:[%s2111 + $0x8] sm:$0xff] %v2038
        %2114 = vst [vmem:[%s2111 + $0x10] sm:$0xff] %v2043
        %2115 = vst [vmem:[%s2111 + $0x18] sm:$0xff] %v2048
        %2116 = vst [vmem:[%s2111 + $0x20] sm:$0xff] %v2053
        %2117 = vst [vmem:[%s2111 + $0x28] sm:$0xff] %v2058
        %2118 = vst [vmem:[%s2111 + $0x30] sm:$0xff] %v2063
        %2119 = vst [vmem:[%s2111 + $0x38] sm:$0xff] %v2068
        %2120 = vst [vmem:[%s2111 + $0x40] sm:$0xff] %v2073
        %2121 = vst [vmem:[%s2111 + $0x48] sm:$0xff] %v2078
        %2122 = vst [vmem:[%s2111 + $0x50] sm:$0xff] %v2083
        %2123 = vst [vmem:[%s2111 + $0x58] sm:$0xff] %v2088
        %2124 = vst [vmem:[%s2111 + $0x60] sm:$0xff] %v2093
        %2125 = vst [vmem:[%s2111 + $0x68] sm:$0xff] %v2098
        %2126 = vst [vmem:[%s2111 + $0x70] sm:$0xff] %v2103
        %2127 = vst [vmem:[%s2111 + $0x78] sm:$0xff] %v2108
        %2128 = vrot.lane.b32.xlu0 %v546, 72
        %v2129 = vpop.permute.xlu0 %2128
        %2130 = vrot.lane.b32.xlu0 %v547, 72
        %v2131 = vpop.permute.xlu0 %2130
        %2132 = vrot.lane.b32.xlu0 %v548, 72
        %v2133 = vpop.permute.xlu0 %2132
        %2134 = vrot.lane.b32.xlu0 %v549, 72
        %v2135 = vpop.permute.xlu0 %2134
        %2136 = vrot.lane.b32.xlu0 %v550, 72
        %v2137 = vpop.permute.xlu0 %2136
        %2138 = vrot.lane.b32.xlu0 %v551, 72
        %v2139 = vpop.permute.xlu0 %2138
        %2140 = vrot.lane.b32.xlu0 %v552, 72
        %v2141 = vpop.permute.xlu0 %2140
        %2142 = vrot.lane.b32.xlu0 %v553, 72
        %v2143 = vpop.permute.xlu0 %2142
        %2144 = vrot.lane.b32.xlu0 %v554, 72
        %v2145 = vpop.permute.xlu0 %2144
        %2146 = vrot.lane.b32.xlu0 %v555, 72
        %v2147 = vpop.permute.xlu0 %2146
        %2148 = vrot.lane.b32.xlu0 %v556, 72
        %v2149 = vpop.permute.xlu0 %2148
        %2150 = vrot.lane.b32.xlu0 %v557, 72
        %v2151 = vpop.permute.xlu0 %2150
        %2152 = vrot.lane.b32.xlu0 %v558, 72
        %v2153 = vpop.permute.xlu0 %2152
        %2154 = vrot.lane.b32.xlu0 %v559, 72
        %v2155 = vpop.permute.xlu0 %2154
        %2156 = vrot.lane.b32.xlu0 %v560, 72
        %v2157 = vpop.permute.xlu0 %2156
        %2158 = vrot.lane.b32.xlu0 %v561, 72
        %v2159 = vpop.permute.xlu0 %2158
        %v2160 = vsel %vm562, %v2129, 0
        %v2162 = vsel %vm562, %v2131, 0
        %v2164 = vsel %vm562, %v2133, 0
        %v2166 = vsel %vm562, %v2135, 0
        %v2168 = vsel %vm562, %v2137, 0
        %v2170 = vsel %vm562, %v2139, 0
        %v2172 = vsel %vm562, %v2141, 0
        %v2174 = vsel %vm562, %v2143, 0
        %v2176 = vsel %vm562, %v2145, 0
        %v2178 = vsel %vm562, %v2147, 0
        %v2180 = vsel %vm562, %v2149, 0
        %v2182 = vsel %vm562, %v2151, 0
        %v2184 = vsel %vm562, %v2153, 0
        %v2186 = vsel %vm562, %v2155, 0
        %v2188 = vsel %vm562, %v2157, 0
        %v2190 = vsel %vm562, %v2159, 0
        %2192 = vmatprep.subr.mxu0 0.0
        %2193 = vmatpush1.msra.mxu0 %v545
        %2194 = vmatprep.subr.mxu0 0.0
        %2195 = vmatpush1.msra.mxu0 0.0
        %2196 = vmatprep.subr.mxu0 0.0
        %2197 = vmatpush1.msra.mxu0 0.0
        %2198 = vmatprep.subr.mxu0 0.0
        %2199 = vmatpush1.msra.mxu0 0.0
        %2200 = vmatprep.subr.mxu0 0.0
        %2201 = vmatpush1.msra.mxu0 0.0
        %2202 = vmatprep.subr.mxu0 0.0
        %2203 = vmatpush1.msra.mxu0 0.0
        %2204 = vmatprep.subr.mxu0 0.0
        %2205 = vmatpush1.msra.mxu0 0.0
        %2206 = vmatprep.subr.mxu0 0.0
        %2207 = vmatpush1.msra.mxu0 0.0
        %2208 = vmatprep.subr.mxu0 0.0
        %2209 = vmatpush1.msra.mxu0 0.0
        %2210 = vmatprep.subr.mxu0 0.0
        %2211 = vmatpush1.msra.mxu0 0.0
        %2212 = vmatprep.subr.mxu0 0.0
        %2213 = vmatpush1.msra.mxu0 0.0
        %2214 = vmatprep.subr.mxu0 0.0
        %2215 = vmatpush1.msra.mxu0 0.0
        %2216 = vmatprep.subr.mxu0 0.0
        %2217 = vmatpush1.msra.mxu0 0.0
        %2218 = vmatprep.subr.mxu0 0.0
        %2219 = vmatpush1.msra.mxu0 0.0
        %2220 = vmatprep.subr.mxu0 0.0
        %2221 = vmatpush1.msra.mxu0 0.0
        %2222 = vmatprep.subr.mxu0 0.0
        %2223 = vmatpush1.msra.mxu0 0.0
        %2224 = vmatprep.subr.mxu0 0.0
        %2225 = vmatpush1.msra.mxu0 0.0
        %2226 = vmatprep.subr.mxu0 0.0
        %2227 = vmatpush1.msra.mxu0 0.0
        %2228 = vmatprep.subr.mxu0 0.0
        %2229 = vmatpush1.msra.mxu0 0.0
        %2230 = vmatprep.subr.mxu0 0.0
        %2231 = vmatpush1.msra.mxu0 0.0
        %2232 = vmatprep.subr.mxu0 0.0
        %2233 = vmatpush1.msra.mxu0 0.0
        %2234 = vmatprep.subr.mxu0 0.0
        %2235 = vmatpush1.msra.mxu0 0.0
        %2236 = vmatprep.subr.mxu0 0.0
        %2237 = vmatpush1.msra.mxu0 0.0
        %2238 = vmatprep.subr.mxu0 0.0
        %2239 = vmatpush1.msra.mxu0 0.0
        %2240 = vmatprep.subr.mxu0 0.0
        %2241 = vmatpush1.msra.mxu0 0.0
        %2242 = vmatprep.subr.mxu0 0.0
        %2243 = vmatpush1.msra.mxu0 0.0
        %2244 = vmatprep.subr.mxu0 0.0
        %2245 = vmatpush1.msra.mxu0 0.0
        %2246 = vmatprep.subr.mxu0 0.0
        %2247 = vmatpush1.msra.mxu0 0.0
        %2248 = vmatprep.subr.mxu0 0.0
        %2249 = vmatpush1.msra.mxu0 0.0
        %2250 = vmatprep.subr.mxu0 0.0
        %2251 = vmatpush1.msra.mxu0 0.0
        %2252 = vmatprep.subr.mxu0 0.0
        %2253 = vmatpush1.msra.mxu0 0.0
        %2254 = vmatprep.subr.mxu0 0.0
        %2255 = vmatpush1.msra.mxu0 0.0
        %2256 = vmatprep.mubr.f32.mxu0 0.0
        %2257 = vmatmul.mubr.f32.gmra.mrb[0].mxu0 %v2160
        %v2258 = vpop.f32.mrb[0].mxu0
        %v2259 = vadd.f32 0.0, %v2258
        %v2260 = vpop.f32.mrb[0].mxu0
        %2261 = vmatprep.mubr.f32.mxu0 0.0
        %2262 = vmatmul.mubr.f32.gmra.mrb[0].mxu0 %v2162
        %v2263 = vpop.f32.mrb[0].mxu0
        %v2264 = vadd.f32 0.0, %v2263
        %v2265 = vpop.f32.mrb[0].mxu0
        %2266 = vmatprep.mubr.f32.mxu0 0.0
        %2267 = vmatmul.mubr.f32.gmra.mrb[0].mxu0 %v2164
        %v2268 = vpop.f32.mrb[0].mxu0
        %v2269 = vadd.f32 0.0, %v2268
        %v2270 = vpop.f32.mrb[0].mxu0
        %2271 = vmatprep.mubr.f32.mxu0 0.0
        %2272 = vmatmul.mubr.f32.gmra.mrb[0].mxu0 %v2166
        %v2273 = vpop.f32.mrb[0].mxu0
        %v2274 = vadd.f32 0.0, %v2273
        %v2275 = vpop.f32.mrb[0].mxu0
        %2276 = vmatprep.mubr.f32.mxu0 0.0
        %2277 = vmatmul.mubr.f32.gmra.mrb[0].mxu0 %v2168
        %v2278 = vpop.f32.mrb[0].mxu0
        %v2279 = vadd.f32 0.0, %v2278
        %v2280 = vpop.f32.mrb[0].mxu0
        %2281 = vmatprep.mubr.f32.mxu0 0.0
        %2282 = vmatmul.mubr.f32.gmra.mrb[0].mxu0 %v2170
        %v2283 = vpop.f32.mrb[0].mxu0
        %v2284 = vadd.f32 0.0, %v2283
        %v2285 = vpop.f32.mrb[0].mxu0
        %2286 = vmatprep.mubr.f32.mxu0 0.0
        %2287 = vmatmul.mubr.f32.gmra.mrb[0].mxu0 %v2172
        %v2288 = vpop.f32.mrb[0].mxu0
        %v2289 = vadd.f32 0.0, %v2288
        %v2290 = vpop.f32.mrb[0].mxu0
        %2291 = vmatprep.mubr.f32.mxu0 0.0
        %2292 = vmatmul.mubr.f32.gmra.mrb[0].mxu0 %v2174
        %v2293 = vpop.f32.mrb[0].mxu0
        %v2294 = vadd.f32 0.0, %v2293
        %v2295 = vpop.f32.mrb[0].mxu0
        %2296 = vmatprep.mubr.f32.mxu0 0.0
        %2297 = vmatmul.mubr.f32.gmra.mrb[0].mxu0 %v2176
        %v2298 = vpop.f32.mrb[0].mxu0
        %v2299 = vadd.f32 0.0, %v2298
        %v2300 = vpop.f32.mrb[0].mxu0
        %2301 = vmatprep.mubr.f32.mxu0 0.0
        %2302 = vmatmul.mubr.f32.gmra.mrb[0].mxu0 %v2178
        %v2303 = vpop.f32.mrb[0].mxu0
        %v2304 = vadd.f32 0.0, %v2303
        %v2305 = vpop.f32.mrb[0].mxu0
        %2306 = vmatprep.mubr.f32.mxu0 0.0
        %2307 = vmatmul.mubr.f32.gmra.mrb[0].mxu0 %v2180
        %v2308 = vpop.f32.mrb[0].mxu0
        %v2309 = vadd.f32 0.0, %v2308
        %v2310 = vpop.f32.mrb[0].mxu0
        %2311 = vmatprep.mubr.f32.mxu0 0.0
        %2312 = vmatmul.mubr.f32.gmra.mrb[0].mxu0 %v2182
        %v2313 = vpop.f32.mrb[0].mxu0
        %v2314 = vadd.f32 0.0, %v2313
        %v2315 = vpop.f32.mrb[0].mxu0
        %2316 = vmatprep.mubr.f32.mxu0 0.0
        %2317 = vmatmul.mubr.f32.gmra.mrb[0].mxu0 %v2184
        %v2318 = vpop.f32.mrb[0].mxu0
        %v2319 = vadd.f32 0.0, %v2318
        %v2320 = vpop.f32.mrb[0].mxu0
        %2321 = vmatprep.mubr.f32.mxu0 0.0
        %2322 = vmatmul.mubr.f32.gmra.mrb[0].mxu0 %v2186
        %v2323 = vpop.f32.mrb[0].mxu0
        %v2324 = vadd.f32 0.0, %v2323
        %v2325 = vpop.f32.mrb[0].mxu0
        %2326 = vmatprep.mubr.f32.mxu0 0.0
        %2327 = vmatmul.mubr.f32.gmra.mrb[0].mxu0 %v2188
        %v2328 = vpop.f32.mrb[0].mxu0
        %v2329 = vadd.f32 0.0, %v2328
        %v2330 = vpop.f32.mrb[0].mxu0
        %2331 = vmatprep.mubr.f32.mxu0 0.0
        %2332 = vmatmul.mubr.f32.gmra.mrb[0].mxu0 %v2190
        %v2333 = vpop.f32.mrb[0].mxu0
        %v2334 = vadd.f32 0.0, %v2333
        %v2335 = vpop.f32.mrb[0].mxu0
        %2336 = vdwg.mxu0
        %s2337 = scalar_lea.vmem %s297, 896 [#allocation8]
        %2338 = vst [vmem:[%s2337] sm:$0xff] %v2259
        %2339 = vst [vmem:[%s2337 + $0x8] sm:$0xff] %v2264
        %2340 = vst [vmem:[%s2337 + $0x10] sm:$0xff] %v2269
        %2341 = vst [vmem:[%s2337 + $0x18] sm:$0xff] %v2274
        %2342 = vst [vmem:[%s2337 + $0x20] sm:$0xff] %v2279
        %2343 = vst [vmem:[%s2337 + $0x28] sm:$0xff] %v2284
        %2344 = vst [vmem:[%s2337 + $0x30] sm:$0xff] %v2289
        %2345 = vst [vmem:[%s2337 + $0x38] sm:$0xff] %v2294
        %2346 = vst [vmem:[%s2337 + $0x40] sm:$0xff] %v2299
        %2347 = vst [vmem:[%s2337 + $0x48] sm:$0xff] %v2304
        %2348 = vst [vmem:[%s2337 + $0x50] sm:$0xff] %v2309
        %2349 = vst [vmem:[%s2337 + $0x58] sm:$0xff] %v2314
        %2350 = vst [vmem:[%s2337 + $0x60] sm:$0xff] %v2319
        %2351 = vst [vmem:[%s2337 + $0x68] sm:$0xff] %v2324
        %2352 = vst [vmem:[%s2337 + $0x70] sm:$0xff] %v2329
        %2353 = vst [vmem:[%s2337 + $0x78] sm:$0xff] %v2334
        %s2354 = sand.u32 %s149, 1
        %s2355 = scalar_lea.sflag [#allocation5], %s2354
        %s2356 = sand.u32 %s149, 1
        %s2357 = smul.addr %s2356, 1024
        %s2358 = scalar_lea.vmem [#allocation8], %s2357
        // Predicated region
        $region45: #{tpu_custom_call.1} parent=31 // pred_check
          %p2359 = pneg %p159
        $region46: #{tpu_custom_call.1} parent=31 // pred_check_branch
          %2361 = sbr.rel (%p2359) target = $region48
        $region47: #{tpu_custom_call.1} parent=31 // pred_region
          %s2362 = smul.u32 16, %s31
          %s2364 = ssub.s32 16384, 16384
          %2365 = vsyncadd %s2355, %s2364
          %s2366 = sadd.s32 %s32, %s2362
          %s2367 = smul.addr %s29, 128
          %s2368 = sadd.s32 %s2366, %s2367
          %s2369 = smul.addr %s30, 512
          %s2370 = sadd.s32 %s2368, %s2369
          %s2371 = smul.addr %s2370, 128
          %s2372 = scalar_lea.hbm %s3, %s2371
          %s2373 = sshll.u32 %s2358, 4
          %s2374 = int_to_ptr.vmem [resolvable:$true] %s2373
          %2379 = dma.vmem_to_hbm [thread:$0]  %s2374, 16384, %s2372, %s2355, 128, 128, 8
        $region48: #{tpu_custom_call.1} parent=31 // pred_fallthru
          _
      $region32: #{tpu_custom_call.1} parent=5 // pred_fallthru
        _
      %p2380 = scmp.le.s32.totalorder 2, %s18
      // Predicated region
      $region49: #{tpu_custom_call.1} parent=5 // pred_check
        %p2381 = pneg %p2380
      $region50: #{tpu_custom_call.1} parent=5 // pred_check_branch
        %2383 = sbr.rel (%p2381) target = $region52
      $region51: #{tpu_custom_call.1} parent=5 // pred_region
        %s2384 = ssub.s32 %s18, 2
        // Predicated region
        $region53: #{tpu_custom_call.1} parent=51 // pred_check
          %p2385 = pneg %p165
        $region54: #{tpu_custom_call.1} parent=51 // pred_check_branch
          %2387 = sbr.rel (%p2385) target = $region56
        $region55: #{tpu_custom_call.1} parent=51 // pred_region
          %s2388 = sand.u32 %s150, 1
          %s2389 = scalar_lea.sflag [#allocation5], %s2388
          %s2390 = sand.u32 %s150, 1
          %s2391 = smul.addr %s2390, 1024
          %s2392 = scalar_lea.vmem [#allocation8], %s2391
          %2393 = dma.done %s2389, 16384
        $region56: #{tpu_custom_call.1} parent=51 // pred_fallthru
          _
      $region52: #{tpu_custom_call.1} parent=5 // pred_fallthru
        _
    $region6: #{tpu_custom_call.1} parent=1 // loop_footer
      %s22 = sadd.s32 1, %s18
    $region7: #{tpu_custom_call.1} parent=1 // loop_footer_branch
      %17 = sbr.rel target = $region3
    $region8: #{tpu_custom_call.1} parent=1 // loop_exit
      _
    %2394 = vsyncpa [#allocation4], 1
    %s2395 = scalar_lea.sflag [#allocation4], 1
    %2396 = vsyncpa %s2395, 1
    %2397 = vsyncpa [#allocation7], 1
    %s2398 = scalar_lea.sflag [#allocation7], 1
    %2399 = vsyncpa %s2398, 1
    %2400 = vsyncpa [#allocation5], 1
    %s2401 = scalar_lea.sflag [#allocation5], 1
    %2402 = vsyncpa %s2401, 1

</llo_original>
